<compile_context>
chip_gen: v7x
topology: tpu7x:2x2x1
jax: 0.10.0
libtpu: 0.0.40
codegen_flags: <defaults>
</compile_context>

<pallas_src>
import jax
import jax.numpy as jnp
from jax.experimental import pallas as pl
from jax.experimental.pallas import tpu as pltpu

# ----------------------------- configuration --------------------------------
B = 2                      # batch
C_IN = 3                   # image channels
IMG = 16                   # image H = W
PS = 4                     # patch size
GRID_HW = IMG // PS        # 4 -> 4x4 = 16 patches
NUM_PATCHES = GRID_HW * GRID_HW
SEQ = NUM_PATCHES + 1      # 17 (CLS + patches)
S_PAD = 24                 # SEQ padded up to a multiple of 8 (f32 sublanes)
PATCH_DIM = C_IN * PS * PS # 48
D = 32                     # ViT hidden
D_MLP = 4 * D              # 128
N_BLOCKS = 2               # transformer depth (synthetic)
DOWNSAMPLE = 0.5           # config.downsample_ratio
C_SHUF = int(D / (DOWNSAMPLE * DOWNSAMPLE))           # 128 channels after shuffle
N_TOK = int(NUM_PATCHES * DOWNSAMPLE * DOWNSAMPLE)    # 4 tokens after shuffle
LLM_D = 64                 # mlp1 output hidden


# ------------------------------ in-kernel math -------------------------------
def _gelu(x):
    # tanh-approximate GELU (PyTorch nn.GELU default is erf-based; diff ~1e-3)
    return 0.5 * x * (1.0 + jnp.tanh(0.7978845608028654 * (x + 0.044715 * x * x * x)))


def _layernorm(x, g, b, eps=1e-6):
    mu = jnp.mean(x, axis=-1, keepdims=True)
    var = jnp.mean((x - mu) ** 2, axis=-1, keepdims=True)
    return (x - mu) * jax.lax.rsqrt(var + eps) * g + b


def _mm(a, b):
    """MXU matmul: bf16 operands, f32 accumulation."""
    return jnp.dot(a.astype(jnp.bfloat16), b.astype(jnp.bfloat16),
                   preferred_element_type=jnp.float32)


# ------------------------------ fused kernel ---------------------------------
def _fused_vision_kernel(patches_ref, patch_w_ref, pos_cls_ref,
                         wqkv_ref, wo_ref, w1_ref, w2_ref, vec_ref,
                         mlp_ln_ref, mlp_w1_ref, mlp_w2_ref, mlp_b_ref,
                         o_ref):
    # --- patch embed + CLS + positional embedding ---
    # patches row 0 (CLS slot) and rows SEQ..S_PAD-1 are zero; the CLS token and
    # the patch-embed bias are pre-folded into pos_cls, so one matmul suffices.
    tokens = _mm(patches_ref[...], patch_w_ref[...]) + pos_cls_ref[...]  # [S_PAD, D] f32

    # Padded-key mask (hoisted out of the block loop).
    key_mask = jax.lax.broadcasted_iota(jnp.int32, (S_PAD, S_PAD), 1) < SEQ
    scale = 1.0 / (D ** 0.5)

    # --- transformer blocks (pre-LN, fused QKV), unrolled ---
    for blk in range(N_BLOCKS):
        vec = vec_ref[blk]                            # [8, 128] f32 slab
        ln1g, ln1b = vec[0:1, :D], vec[1:2, :D]
        bqkv = vec[2:3, :3 * D]
        bo = vec[3:4, :D]
        ln2g, ln2b = vec[4:5, :D], vec[5:6, :D]
        b1 = vec[6:7, :D_MLP]
        b2 = vec[7:8, :D]

        # attention
        h = _layernorm(tokens, ln1g, ln1b)
        qkv = _mm(h, wqkv_ref[blk]) + bqkv            # [S_PAD, 3D]
        q, k, v = qkv[:, :D], qkv[:, D:2 * D], qkv[:, 2 * D:]
        s = jax.lax.dot_general(q.astype(jnp.bfloat16), k.astype(jnp.bfloat16),
                                (((1,), (1,)), ((), ())),
                                preferred_element_type=jnp.float32) * scale
        s = jnp.where(key_mask, s, -1e30)             # mask padded key columns
        s = s - jnp.max(s, axis=-1, keepdims=True)
        p = jnp.exp(s)
        p = p * pl.reciprocal(jnp.sum(p, axis=-1, keepdims=True), approx=True)
        ctx = _mm(p, v)                               # [S_PAD, D]
        tokens = tokens + _mm(ctx, wo_ref[blk]) + bo

        # MLP
        h2 = _layernorm(tokens, ln2g, ln2b)
        mid = _gelu(_mm(h2, w1_ref[blk]) + b1)
        tokens = tokens + _mm(mid, w2_ref[blk]) + b2

    # --- wrapper logic: drop CLS, pixel_shuffle (scale 0.5), mlp1 ---
    tok = tokens[1:1 + NUM_PATCHES, :]                # [16, D], grid row-major

    # pixel_shuffle: output token t=(w//2)*2+(h//2) concatenates the channels of
    # its 2x2 spatial block at channel offset 64*(w%2)+32*(h%2); input tok=w*4+h.
    def block_rows(base):                             # rows {base, base+2, base+8, base+10}
        return jnp.concatenate([tok[base + 0:base + 1],
                                tok[base + 2:base + 3],
                                tok[base + 8:base + 9],
                                tok[base + 10:base + 11]], axis=0)      # [4, D]

    shuf = jnp.concatenate([block_rows(0), block_rows(1),
                            block_rows(4), block_rows(5)], axis=-1)     # [4, 128]

    # mlp1 = LayerNorm -> Linear -> GELU -> Linear
    h = _layernorm(shuf, mlp_ln_ref[0:1, :], mlp_ln_ref[1:2, :])
    h = _gelu(_mm(h, mlp_w1_ref[...]) + mlp_b_ref[0:1, :])              # [4, LLM_D]
    y = _mm(h, mlp_w2_ref[...]) + mlp_b_ref[1:2, :]                     # [4, LLM_D]

    # lane-dense store: row-major flatten [N_TOK, LLM_D] -> [1, N_TOK*LLM_D]
    o_ref[...] = jnp.concatenate([y[t:t + 1] for t in range(N_TOK)], axis=-1)


# ------------------------------ host wrapper ---------------------------------
def forward(pixel_values, params):
    B_ = pixel_values.shape[0]

    # im2col patch extraction: NCHW -> [B, P, C*ps*ps] (one tiny XLA reorder of
    # the 6 KB raw input; everything downstream is a single fused kernel).
    # Pad to the padded token layout: row 0 = CLS slot, rows SEQ..S_PAD-1 = pad.
    x = pixel_values.reshape(B_, C_IN, GRID_HW, PS, GRID_HW, PS)
    x = x.transpose(0, 2, 4, 1, 3, 5).reshape(B_, NUM_PATCHES, PATCH_DIM)
    patches = jnp.pad(x, ((0, 0), (1, S_PAD - SEQ), (0, 0)))

    def wspec2(shape):
        return pl.BlockSpec(shape, lambda b: (0, 0))

    def wspec3(shape):
        return pl.BlockSpec(shape, lambda b: (0, 0, 0))

    out_flat = pl.pallas_call(
        _fused_vision_kernel,
        grid=(B_,),
        in_specs=[
            pl.BlockSpec((None, S_PAD, PATCH_DIM), lambda b: (b, 0, 0)),  # patches
            wspec2((PATCH_DIM, D)),              # patch_w
            wspec2((S_PAD, D)),                  # pos_cls (CLS + pos + patch bias)
            wspec3((N_BLOCKS, D, 3 * D)),        # fused QKV weights
            wspec3((N_BLOCKS, D, D)),            # attn output proj
            wspec3((N_BLOCKS, D, D_MLP)),        # fc1
            wspec3((N_BLOCKS, D_MLP, D)),        # fc2
            wspec3((N_BLOCKS, 8, D_MLP)),        # packed LN/bias slab
            wspec2((2, C_SHUF)),                 # mlp1 LN gamma/beta
            wspec2((C_SHUF, LLM_D)),             # mlp1 linear1
            wspec2((LLM_D, LLM_D)),              # mlp1 linear2
            wspec2((2, LLM_D)),                  # mlp1 biases
        ],
        out_specs=pl.BlockSpec((None, 1, N_TOK * LLM_D), lambda b: (b, 0, 0)),
        out_shape=jax.ShapeDtypeStruct((B_, 1, N_TOK * LLM_D), jnp.float32),
        compiler_params=pltpu.CompilerParams(dimension_semantics=("parallel",)),
    )(patches, params["patch_w"], params["pos_cls"], params["wqkv"],
      params["wo"], params["w1"], params["w2"], params["vecs"],
      params["mlp_ln"], params["mlp_w1"], params["mlp_w2"], params["mlp_b"])

    # Layout-preserving (free) reshape: [B, 1, 256] -> [B, 4, 64].
    return out_flat.reshape(B_, N_TOK, LLM_D)


# ------------------------------ param init ----------------------------------
def init_params(key):
    # TODO(synk): real module loads pretrained InternViT/mlp1 weights; here they
    # are deterministic synthetic initializations of the same layer shapes.
    def nrm(k, shape, s=0.02):
        return s * jax.random.normal(k, shape, jnp.float32)

    bf16 = jnp.bfloat16
    keys = jax.random.split(key, 4 + N_BLOCKS)

    patch_w = nrm(keys[0], (PATCH_DIM, D))
    patch_b = jnp.zeros((D,), jnp.float32)
    cls_token = nrm(keys[1], (D,))
    pos_embed = nrm(keys[2], (SEQ, D))

    # Fold CLS token and patch-embed bias into one padded positional slab.
    pos_cls = jnp.zeros((S_PAD, D), jnp.float32)
    pos_cls = pos_cls.at[0].set(pos_embed[0] + cls_token)
    pos_cls = pos_cls.at[1:SEQ].set(pos_embed[1:] + patch_b)

    wqkv, wo, w1, w2, vecs = [], [], [], [], []
    for i in range(N_BLOCKS):
        ks = jax.random.split(keys[3 + i], 6)
        wqkv.append(jnp.concatenate(
            [nrm(ks[0], (D, D)), nrm(ks[1], (D, D)), nrm(ks[2], (D, D))], axis=1))
        wo.append(nrm(ks[3], (D, D)))
        w1.append(nrm(ks[4], (D, D_MLP)))
        w2.append(nrm(ks[5], (D_MLP, D)))
        # packed per-block vector slab [8, 128]:
        # rows: 0 ln1_g, 1 ln1_b, 2 b_qkv, 3 b_o, 4 ln2_g, 5 ln2_b, 6 b_fc1, 7 b_fc2
        vec = jnp.zeros((8, D_MLP), jnp.float32)
        vec = vec.at[0, :D].set(1.0)   # ln1 gamma
        vec = vec.at[4, :D].set(1.0)   # ln2 gamma
        vecs.append(vec)

    km = jax.random.split(keys[3 + N_BLOCKS], 2)
    return {
        "patch_w": patch_w.astype(bf16),
        "pos_cls": pos_cls,
        "wqkv": jnp.stack(wqkv).astype(bf16),     # [N_BLOCKS, D, 3D]
        "wo": jnp.stack(wo).astype(bf16),         # [N_BLOCKS, D, D]
        "w1": jnp.stack(w1).astype(bf16),         # [N_BLOCKS, D, D_MLP]
        "w2": jnp.stack(w2).astype(bf16),         # [N_BLOCKS, D_MLP, D]
        "vecs": jnp.stack(vecs),                  # [N_BLOCKS, 8, 128] f32
        "mlp_ln": jnp.concatenate([jnp.ones((1, C_SHUF), jnp.float32),
                                   jnp.zeros((1, C_SHUF), jnp.float32)], axis=0),
        "mlp_w1": nrm(km[0], (C_SHUF, LLM_D)).astype(bf16),
        "mlp_w2": nrm(km[1], (LLM_D, LLM_D)).astype(bf16),
        "mlp_b": jnp.zeros((2, LLM_D), jnp.float32),
    }


# ---------------------------------- main -------------------------------------
if __name__ == "__main__":
    key = jax.random.PRNGKey(0)
    k_param, k_inp = jax.random.split(key)
    params = init_params(k_param)
    pixel_values = jax.random.normal(k_inp, (B, C_IN, IMG, IMG), jnp.float32)

    fwd = jax.jit(forward)
    out = jax.block_until_ready(fwd(pixel_values, params))

    assert out.shape == (B, NUM_PATCHES // 4, LLM_D), out.shape
    assert bool(jnp.all(jnp.isfinite(out)))
    print("KERNEL_OK")
</pallas_src>

<mosaic_0001>
module attributes {stable_mosaic.version = 11 : i64} {
  func.func @_fused_vision_kernel(%arg0: i32, %arg1: memref<1x24x48xf32, #tpu.memory_space<vmem>>, %arg2: memref<48x32xbf16, #tpu.memory_space<vmem>>, %arg3: memref<24x32xf32, #tpu.memory_space<vmem>>, %arg4: memref<2x32x96xbf16, #tpu.memory_space<vmem>>, %arg5: memref<2x32x32xbf16, #tpu.memory_space<vmem>>, %arg6: memref<2x32x128xbf16, #tpu.memory_space<vmem>>, %arg7: memref<2x128x32xbf16, #tpu.memory_space<vmem>>, %arg8: memref<2x8x128xf32, #tpu.memory_space<vmem>>, %arg9: memref<2x128xf32, #tpu.memory_space<vmem>>, %arg10: memref<128x64xbf16, #tpu.memory_space<vmem>>, %arg11: memref<64x64xbf16, #tpu.memory_space<vmem>>, %arg12: memref<2x64xf32, #tpu.memory_space<vmem>>, %arg13: memref<1x1x256xf32, #tpu.memory_space<vmem>>) attributes {dimension_semantics = [#tpu.dimension_semantics<parallel>], iteration_bounds = array<i64: 2>, scalar_prefetch = 0 : i64, scratch_operands = 0 : i64, tpu.core_type = #tpu.core_type<tc>, window_params = [{transform_indices = @transform_0, window_bounds = array<i64: 1, 24, 48>}, {pipeline_mode = #tpu.pipeline_mode<synchronous>, transform_indices = @transform_1, window_bounds = array<i64: 48, 32>}, {pipeline_mode = #tpu.pipeline_mode<synchronous>, transform_indices = @transform_2, window_bounds = array<i64: 24, 32>}, {pipeline_mode = #tpu.pipeline_mode<synchronous>, transform_indices = @transform_3, window_bounds = array<i64: 2, 32, 96>}, {pipeline_mode = #tpu.pipeline_mode<synchronous>, transform_indices = @transform_4, window_bounds = array<i64: 2, 32, 32>}, {pipeline_mode = #tpu.pipeline_mode<synchronous>, transform_indices = @transform_5, window_bounds = array<i64: 2, 32, 128>}, {pipeline_mode = #tpu.pipeline_mode<synchronous>, transform_indices = @transform_6, window_bounds = array<i64: 2, 128, 32>}, {pipeline_mode = #tpu.pipeline_mode<synchronous>, transform_indices = @transform_7, window_bounds = array<i64: 2, 8, 128>}, {pipeline_mode = #tpu.pipeline_mode<synchronous>, transform_indices = @transform_8, window_bounds = array<i64: 2, 128>}, {pipeline_mode = #tpu.pipeline_mode<synchronous>, transform_indices = @transform_9, window_bounds = array<i64: 128, 64>}, {pipeline_mode = #tpu.pipeline_mode<synchronous>, transform_indices = @transform_10, window_bounds = array<i64: 64, 64>}, {pipeline_mode = #tpu.pipeline_mode<synchronous>, transform_indices = @transform_11, window_bounds = array<i64: 2, 64>}, {transform_indices = @transform_12, window_bounds = array<i64: 1, 1, 256>}]} {
    %c0 = arith.constant 0 : index
    %c0_0 = arith.constant 0 : index
    %c0_1 = arith.constant 0 : index
    %0 = vector.load %arg1[%c0, %c0_0, %c0_1] : memref<1x24x48xf32, #tpu.memory_space<vmem>>, vector<1x24x48xf32>
    %1 = vector.shape_cast %0 : vector<1x24x48xf32> to vector<24x48xf32>
    %c0_2 = arith.constant 0 : index
    %c0_3 = arith.constant 0 : index
    %2 = vector.load %arg2[%c0_2, %c0_3] : memref<48x32xbf16, #tpu.memory_space<vmem>>, vector<48x32xbf16>
    %3 = arith.truncf %1 : vector<24x48xf32> to vector<24x48xbf16>
    %cst = arith.constant dense<0.000000e+00> : vector<24x32xf32>
    %4 = tpu.matmul %3, %2, %cst {dimension_numbers = #tpu.dot_dimension_numbers<[1], [0], [0], [1], [0, 0, 1, 1], [], []>} : vector<24x48xbf16>, vector<48x32xbf16>, vector<24x32xf32> -> vector<24x32xf32>
    %c0_4 = arith.constant 0 : index
    %c0_5 = arith.constant 0 : index
    %5 = vector.load %arg3[%c0_4, %c0_5] : memref<24x32xf32, #tpu.memory_space<vmem>>, vector<24x32xf32>
    %6 = arith.addf %4, %5 : vector<24x32xf32>
    %7 = tpu.iota {dimensions = array<i32: 1>} : vector<24x24xi32>
    %c17_i32 = arith.constant 17 : i32
    %8 = vector.broadcast %c17_i32 : i32 to vector<24x24xi32>
    %9 = arith.cmpi slt, %7, %8 : vector<24x24xi32>
    %c0_6 = arith.constant 0 : index
    %c0_7 = arith.constant 0 : index
    %c0_8 = arith.constant 0 : index
    %10 = vector.load %arg8[%c0_6, %c0_7, %c0_8] : memref<2x8x128xf32, #tpu.memory_space<vmem>>, vector<1x8x128xf32>
    %11 = vector.shape_cast %10 : vector<1x8x128xf32> to vector<8x128xf32>
    %12 = vector.extract_strided_slice %11 {offsets = [0, 0], sizes = [1, 32], strides = [1, 1]} : vector<8x128xf32> to vector<1x32xf32>
    %13 = vector.extract_strided_slice %11 {offsets = [1, 0], sizes = [1, 32], strides = [1, 1]} : vector<8x128xf32> to vector<1x32xf32>
    %14 = vector.extract_strided_slice %11 {offsets = [2, 0], sizes = [1, 96], strides = [1, 1]} : vector<8x128xf32> to vector<1x96xf32>
    %15 = vector.extract_strided_slice %11 {offsets = [3, 0], sizes = [1, 32], strides = [1, 1]} : vector<8x128xf32> to vector<1x32xf32>
    %16 = vector.extract_strided_slice %11 {offsets = [4, 0], sizes = [1, 32], strides = [1, 1]} : vector<8x128xf32> to vector<1x32xf32>
    %17 = vector.extract_strided_slice %11 {offsets = [5, 0], sizes = [1, 32], strides = [1, 1]} : vector<8x128xf32> to vector<1x32xf32>
    %18 = vector.extract_strided_slice %11 {offsets = [6, 0], sizes = [1, 128], strides = [1, 1]} : vector<8x128xf32> to vector<1x128xf32>
    %19 = vector.extract_strided_slice %11 {offsets = [7, 0], sizes = [1, 32], strides = [1, 1]} : vector<8x128xf32> to vector<1x32xf32>
    %cst_9 = arith.constant dense<0.000000e+00> : vector<24xf32>
    %20 = vector.multi_reduction <add>, %6, %cst_9 [1] : vector<24x32xf32> to vector<24xf32>
    %21 = vector.shape_cast %20 : vector<24xf32> to vector<24x1xf32>
    %cst_10 = arith.constant 3.200000e+01 : f32
    %22 = vector.broadcast %cst_10 : f32 to vector<24x1xf32>
    %23 = arith.divf %21, %22 : vector<24x1xf32>
    %24 = vector.broadcast %23 : vector<24x1xf32> to vector<24x32xf32>
    %25 = arith.subf %6, %24 : vector<24x32xf32>
    %26 = arith.mulf %25, %25 : vector<24x32xf32>
    %cst_11 = arith.constant dense<0.000000e+00> : vector<24xf32>
    %27 = vector.multi_reduction <add>, %26, %cst_11 [1] : vector<24x32xf32> to vector<24xf32>
    %28 = vector.shape_cast %27 : vector<24xf32> to vector<24x1xf32>
    %cst_12 = arith.constant 3.200000e+01 : f32
    %29 = vector.broadcast %cst_12 : f32 to vector<24x1xf32>
    %30 = arith.divf %28, %29 : vector<24x1xf32>
    %31 = vector.broadcast %23 : vector<24x1xf32> to vector<24x32xf32>
    %32 = arith.subf %6, %31 : vector<24x32xf32>
    %cst_13 = arith.constant 9.99999997E-7 : f32
    %33 = vector.broadcast %cst_13 : f32 to vector<24x1xf32>
    %34 = arith.addf %30, %33 : vector<24x1xf32>
    %35 = math.rsqrt %34 : vector<24x1xf32>
    %36 = vector.broadcast %35 : vector<24x1xf32> to vector<24x32xf32>
    %37 = arith.mulf %32, %36 : vector<24x32xf32>
    %38 = vector.broadcast %12 : vector<1x32xf32> to vector<24x32xf32>
    %39 = arith.mulf %37, %38 : vector<24x32xf32>
    %40 = vector.broadcast %13 : vector<1x32xf32> to vector<24x32xf32>
    %41 = arith.addf %39, %40 : vector<24x32xf32>
    %c0_14 = arith.constant 0 : index
    %c0_15 = arith.constant 0 : index
    %c0_16 = arith.constant 0 : index
    %42 = vector.load %arg4[%c0_14, %c0_15, %c0_16] : memref<2x32x96xbf16, #tpu.memory_space<vmem>>, vector<1x32x96xbf16>
    %43 = vector.shape_cast %42 : vector<1x32x96xbf16> to vector<32x96xbf16>
    %44 = arith.truncf %41 : vector<24x32xf32> to vector<24x32xbf16>
    %cst_17 = arith.constant dense<0.000000e+00> : vector<24x96xf32>
    %45 = tpu.matmul %44, %43, %cst_17 {dimension_numbers = #tpu.dot_dimension_numbers<[1], [0], [0], [1], [0, 0, 1, 1], [], []>} : vector<24x32xbf16>, vector<32x96xbf16>, vector<24x96xf32> -> vector<24x96xf32>
    %46 = vector.broadcast %14 : vector<1x96xf32> to vector<24x96xf32>
    %47 = arith.addf %45, %46 : vector<24x96xf32>
    %48 = vector.extract_strided_slice %47 {offsets = [0, 0], sizes = [24, 32], strides = [1, 1]} : vector<24x96xf32> to vector<24x32xf32>
    %49 = vector.extract_strided_slice %47 {offsets = [0, 32], sizes = [24, 32], strides = [1, 1]} : vector<24x96xf32> to vector<24x32xf32>
    %50 = vector.extract_strided_slice %47 {offsets = [0, 64], sizes = [24, 32], strides = [1, 1]} : vector<24x96xf32> to vector<24x32xf32>
    %51 = arith.truncf %48 : vector<24x32xf32> to vector<24x32xbf16>
    %52 = arith.truncf %49 : vector<24x32xf32> to vector<24x32xbf16>
    %cst_18 = arith.constant dense<0.000000e+00> : vector<24x24xf32>
    %53 = tpu.matmul %51, %52, %cst_18 {dimension_numbers = #tpu.dot_dimension_numbers<[1], [1], [0], [0], [0, 0, 1, 0], [], []>} : vector<24x32xbf16>, vector<24x32xbf16>, vector<24x24xf32> -> vector<24x24xf32>
    %cst_19 = arith.constant 0.176776692 : f32
    %54 = vector.broadcast %cst_19 : f32 to vector<24x24xf32>
    %55 = arith.mulf %53, %54 : vector<24x24xf32>
    %cst_20 = arith.constant -1.000000e+30 : f32
    %56 = vector.broadcast %cst_20 : f32 to vector<24x24xf32>
    %57 = arith.select %9, %55, %56 : vector<24x24xi1>, vector<24x24xf32>
    %cst_21 = arith.constant dense<0xFF800000> : vector<24xf32>
    %58 = vector.multi_reduction <maximumf>, %57, %cst_21 [1] : vector<24x24xf32> to vector<24xf32>
    %59 = vector.shape_cast %58 : vector<24xf32> to vector<24x1xf32>
    %60 = vector.broadcast %59 : vector<24x1xf32> to vector<24x24xf32>
    %61 = arith.subf %57, %60 : vector<24x24xf32>
    %62 = math.exp %61 : vector<24x24xf32>
    %cst_22 = arith.constant dense<0.000000e+00> : vector<24xf32>
    %63 = vector.multi_reduction <add>, %62, %cst_22 [1] : vector<24x24xf32> to vector<24xf32>
    %64 = vector.shape_cast %63 : vector<24xf32> to vector<24x1xf32>
    %65 = tpu.reciprocal %64 {approx = true} : vector<24x1xf32> -> vector<24x1xf32>
    %66 = vector.broadcast %65 : vector<24x1xf32> to vector<24x24xf32>
    %67 = arith.mulf %62, %66 : vector<24x24xf32>
    %68 = arith.truncf %67 : vector<24x24xf32> to vector<24x24xbf16>
    %69 = arith.truncf %50 : vector<24x32xf32> to vector<24x32xbf16>
    %cst_23 = arith.constant dense<0.000000e+00> : vector<24x32xf32>
    %70 = tpu.matmul %68, %69, %cst_23 {dimension_numbers = #tpu.dot_dimension_numbers<[1], [0], [0], [1], [0, 0, 1, 1], [], []>} : vector<24x24xbf16>, vector<24x32xbf16>, vector<24x32xf32> -> vector<24x32xf32>
    %c0_24 = arith.constant 0 : index
    %c0_25 = arith.constant 0 : index
    %c0_26 = arith.constant 0 : index
    %71 = vector.load %arg5[%c0_24, %c0_25, %c0_26] : memref<2x32x32xbf16, #tpu.memory_space<vmem>>, vector<1x32x32xbf16>
    %72 = vector.shape_cast %71 : vector<1x32x32xbf16> to vector<32x32xbf16>
    %73 = arith.truncf %70 : vector<24x32xf32> to vector<24x32xbf16>
    %cst_27 = arith.constant dense<0.000000e+00> : vector<24x32xf32>
    %74 = tpu.matmul %73, %72, %cst_27 {dimension_numbers = #tpu.dot_dimension_numbers<[1], [0], [0], [1], [0, 0, 1, 1], [], []>} : vector<24x32xbf16>, vector<32x32xbf16>, vector<24x32xf32> -> vector<24x32xf32>
    %75 = arith.addf %6, %74 : vector<24x32xf32>
    %76 = vector.broadcast %15 : vector<1x32xf32> to vector<24x32xf32>
    %77 = arith.addf %75, %76 : vector<24x32xf32>
    %cst_28 = arith.constant dense<0.000000e+00> : vector<24xf32>
    %78 = vector.multi_reduction <add>, %77, %cst_28 [1] : vector<24x32xf32> to vector<24xf32>
    %79 = vector.shape_cast %78 : vector<24xf32> to vector<24x1xf32>
    %cst_29 = arith.constant 3.200000e+01 : f32
    %80 = vector.broadcast %cst_29 : f32 to vector<24x1xf32>
    %81 = arith.divf %79, %80 : vector<24x1xf32>
    %82 = vector.broadcast %81 : vector<24x1xf32> to vector<24x32xf32>
    %83 = arith.subf %77, %82 : vector<24x32xf32>
    %84 = arith.mulf %83, %83 : vector<24x32xf32>
    %cst_30 = arith.constant dense<0.000000e+00> : vector<24xf32>
    %85 = vector.multi_reduction <add>, %84, %cst_30 [1] : vector<24x32xf32> to vector<24xf32>
    %86 = vector.shape_cast %85 : vector<24xf32> to vector<24x1xf32>
    %cst_31 = arith.constant 3.200000e+01 : f32
    %87 = vector.broadcast %cst_31 : f32 to vector<24x1xf32>
    %88 = arith.divf %86, %87 : vector<24x1xf32>
    %89 = vector.broadcast %81 : vector<24x1xf32> to vector<24x32xf32>
    %90 = arith.subf %77, %89 : vector<24x32xf32>
    %cst_32 = arith.constant 9.99999997E-7 : f32
    %91 = vector.broadcast %cst_32 : f32 to vector<24x1xf32>
    %92 = arith.addf %88, %91 : vector<24x1xf32>
    %93 = math.rsqrt %92 : vector<24x1xf32>
    %94 = vector.broadcast %93 : vector<24x1xf32> to vector<24x32xf32>
    %95 = arith.mulf %90, %94 : vector<24x32xf32>
    %96 = vector.broadcast %16 : vector<1x32xf32> to vector<24x32xf32>
    %97 = arith.mulf %95, %96 : vector<24x32xf32>
    %98 = vector.broadcast %17 : vector<1x32xf32> to vector<24x32xf32>
    %99 = arith.addf %97, %98 : vector<24x32xf32>
    %c0_33 = arith.constant 0 : index
    %c0_34 = arith.constant 0 : index
    %c0_35 = arith.constant 0 : index
    %100 = vector.load %arg6[%c0_33, %c0_34, %c0_35] : memref<2x32x128xbf16, #tpu.memory_space<vmem>>, vector<1x32x128xbf16>
    %101 = vector.shape_cast %100 : vector<1x32x128xbf16> to vector<32x128xbf16>
    %102 = arith.truncf %99 : vector<24x32xf32> to vector<24x32xbf16>
    %cst_36 = arith.constant dense<0.000000e+00> : vector<24x128xf32>
    %103 = tpu.matmul %102, %101, %cst_36 {dimension_numbers = #tpu.dot_dimension_numbers<[1], [0], [0], [1], [0, 0, 1, 1], [], []>} : vector<24x32xbf16>, vector<32x128xbf16>, vector<24x128xf32> -> vector<24x128xf32>
    %104 = vector.broadcast %18 : vector<1x128xf32> to vector<24x128xf32>
    %105 = arith.addf %103, %104 : vector<24x128xf32>
    %cst_37 = arith.constant 5.000000e-01 : f32
    %106 = vector.broadcast %cst_37 : f32 to vector<24x128xf32>
    %107 = arith.mulf %106, %105 : vector<24x128xf32>
    %cst_38 = arith.constant 4.471500e-02 : f32
    %108 = vector.broadcast %cst_38 : f32 to vector<24x128xf32>
    %109 = arith.mulf %108, %105 : vector<24x128xf32>
    %110 = arith.mulf %109, %105 : vector<24x128xf32>
    %111 = arith.mulf %110, %105 : vector<24x128xf32>
    %112 = arith.addf %105, %111 : vector<24x128xf32>
    %cst_39 = arith.constant 0.797884583 : f32
    %113 = vector.broadcast %cst_39 : f32 to vector<24x128xf32>
    %114 = arith.mulf %113, %112 : vector<24x128xf32>
    %115 = math.tanh %114 : vector<24x128xf32>
    %cst_40 = arith.constant 1.000000e+00 : f32
    %116 = vector.broadcast %cst_40 : f32 to vector<24x128xf32>
    %117 = arith.addf %116, %115 : vector<24x128xf32>
    %118 = arith.mulf %107, %117 : vector<24x128xf32>
    %c0_41 = arith.constant 0 : index
    %c0_42 = arith.constant 0 : index
    %c0_43 = arith.constant 0 : index
    %119 = vector.load %arg7[%c0_41, %c0_42, %c0_43] : memref<2x128x32xbf16, #tpu.memory_space<vmem>>, vector<1x128x32xbf16>
    %120 = vector.shape_cast %119 : vector<1x128x32xbf16> to vector<128x32xbf16>
    %121 = arith.truncf %118 : vector<24x128xf32> to vector<24x128xbf16>
    %cst_44 = arith.constant dense<0.000000e+00> : vector<24x32xf32>
    %122 = tpu.matmul %121, %120, %cst_44 {dimension_numbers = #tpu.dot_dimension_numbers<[1], [0], [0], [1], [0, 0, 1, 1], [], []>} : vector<24x128xbf16>, vector<128x32xbf16>, vector<24x32xf32> -> vector<24x32xf32>
    %123 = arith.addf %77, %122 : vector<24x32xf32>
    %124 = vector.broadcast %19 : vector<1x32xf32> to vector<24x32xf32>
    %125 = arith.addf %123, %124 : vector<24x32xf32>
    %c1 = arith.constant 1 : index
    %c0_45 = arith.constant 0 : index
    %c0_46 = arith.constant 0 : index
    %126 = vector.load %arg8[%c1, %c0_45, %c0_46] : memref<2x8x128xf32, #tpu.memory_space<vmem>>, vector<1x8x128xf32>
    %127 = vector.shape_cast %126 : vector<1x8x128xf32> to vector<8x128xf32>
    %128 = vector.extract_strided_slice %127 {offsets = [0, 0], sizes = [1, 32], strides = [1, 1]} : vector<8x128xf32> to vector<1x32xf32>
    %129 = vector.extract_strided_slice %127 {offsets = [1, 0], sizes = [1, 32], strides = [1, 1]} : vector<8x128xf32> to vector<1x32xf32>
    %130 = vector.extract_strided_slice %127 {offsets = [2, 0], sizes = [1, 96], strides = [1, 1]} : vector<8x128xf32> to vector<1x96xf32>
    %131 = vector.extract_strided_slice %127 {offsets = [3, 0], sizes = [1, 32], strides = [1, 1]} : vector<8x128xf32> to vector<1x32xf32>
    %132 = vector.extract_strided_slice %127 {offsets = [4, 0], sizes = [1, 32], strides = [1, 1]} : vector<8x128xf32> to vector<1x32xf32>
    %133 = vector.extract_strided_slice %127 {offsets = [5, 0], sizes = [1, 32], strides = [1, 1]} : vector<8x128xf32> to vector<1x32xf32>
    %134 = vector.extract_strided_slice %127 {offsets = [6, 0], sizes = [1, 128], strides = [1, 1]} : vector<8x128xf32> to vector<1x128xf32>
    %135 = vector.extract_strided_slice %127 {offsets = [7, 0], sizes = [1, 32], strides = [1, 1]} : vector<8x128xf32> to vector<1x32xf32>
    %cst_47 = arith.constant dense<0.000000e+00> : vector<24xf32>
    %136 = vector.multi_reduction <add>, %125, %cst_47 [1] : vector<24x32xf32> to vector<24xf32>
    %137 = vector.shape_cast %136 : vector<24xf32> to vector<24x1xf32>
    %cst_48 = arith.constant 3.200000e+01 : f32
    %138 = vector.broadcast %cst_48 : f32 to vector<24x1xf32>
    %139 = arith.divf %137, %138 : vector<24x1xf32>
    %140 = vector.broadcast %139 : vector<24x1xf32> to vector<24x32xf32>
    %141 = arith.subf %125, %140 : vector<24x32xf32>
    %142 = arith.mulf %141, %141 : vector<24x32xf32>
    %cst_49 = arith.constant dense<0.000000e+00> : vector<24xf32>
    %143 = vector.multi_reduction <add>, %142, %cst_49 [1] : vector<24x32xf32> to vector<24xf32>
    %144 = vector.shape_cast %143 : vector<24xf32> to vector<24x1xf32>
    %cst_50 = arith.constant 3.200000e+01 : f32
    %145 = vector.broadcast %cst_50 : f32 to vector<24x1xf32>
    %146 = arith.divf %144, %145 : vector<24x1xf32>
    %147 = vector.broadcast %139 : vector<24x1xf32> to vector<24x32xf32>
    %148 = arith.subf %125, %147 : vector<24x32xf32>
    %cst_51 = arith.constant 9.99999997E-7 : f32
    %149 = vector.broadcast %cst_51 : f32 to vector<24x1xf32>
    %150 = arith.addf %146, %149 : vector<24x1xf32>
    %151 = math.rsqrt %150 : vector<24x1xf32>
    %152 = vector.broadcast %151 : vector<24x1xf32> to vector<24x32xf32>
    %153 = arith.mulf %148, %152 : vector<24x32xf32>
    %154 = vector.broadcast %128 : vector<1x32xf32> to vector<24x32xf32>
    %155 = arith.mulf %153, %154 : vector<24x32xf32>
    %156 = vector.broadcast %129 : vector<1x32xf32> to vector<24x32xf32>
    %157 = arith.addf %155, %156 : vector<24x32xf32>
    %c1_52 = arith.constant 1 : index
    %c0_53 = arith.constant 0 : index
    %c0_54 = arith.constant 0 : index
    %158 = vector.load %arg4[%c1_52, %c0_53, %c0_54] : memref<2x32x96xbf16, #tpu.memory_space<vmem>>, vector<1x32x96xbf16>
    %159 = vector.shape_cast %158 : vector<1x32x96xbf16> to vector<32x96xbf16>
    %160 = arith.truncf %157 : vector<24x32xf32> to vector<24x32xbf16>
    %cst_55 = arith.constant dense<0.000000e+00> : vector<24x96xf32>
    %161 = tpu.matmul %160, %159, %cst_55 {dimension_numbers = #tpu.dot_dimension_numbers<[1], [0], [0], [1], [0, 0, 1, 1], [], []>} : vector<24x32xbf16>, vector<32x96xbf16>, vector<24x96xf32> -> vector<24x96xf32>
    %162 = vector.broadcast %130 : vector<1x96xf32> to vector<24x96xf32>
    %163 = arith.addf %161, %162 : vector<24x96xf32>
    %164 = vector.extract_strided_slice %163 {offsets = [0, 0], sizes = [24, 32], strides = [1, 1]} : vector<24x96xf32> to vector<24x32xf32>
    %165 = vector.extract_strided_slice %163 {offsets = [0, 32], sizes = [24, 32], strides = [1, 1]} : vector<24x96xf32> to vector<24x32xf32>
    %166 = vector.extract_strided_slice %163 {offsets = [0, 64], sizes = [24, 32], strides = [1, 1]} : vector<24x96xf32> to vector<24x32xf32>
    %167 = arith.truncf %164 : vector<24x32xf32> to vector<24x32xbf16>
    %168 = arith.truncf %165 : vector<24x32xf32> to vector<24x32xbf16>
    %cst_56 = arith.constant dense<0.000000e+00> : vector<24x24xf32>
    %169 = tpu.matmul %167, %168, %cst_56 {dimension_numbers = #tpu.dot_dimension_numbers<[1], [1], [0], [0], [0, 0, 1, 0], [], []>} : vector<24x32xbf16>, vector<24x32xbf16>, vector<24x24xf32> -> vector<24x24xf32>
    %cst_57 = arith.constant 0.176776692 : f32
    %170 = vector.broadcast %cst_57 : f32 to vector<24x24xf32>
    %171 = arith.mulf %169, %170 : vector<24x24xf32>
    %cst_58 = arith.constant -1.000000e+30 : f32
    %172 = vector.broadcast %cst_58 : f32 to vector<24x24xf32>
    %173 = arith.select %9, %171, %172 : vector<24x24xi1>, vector<24x24xf32>
    %cst_59 = arith.constant dense<0xFF800000> : vector<24xf32>
    %174 = vector.multi_reduction <maximumf>, %173, %cst_59 [1] : vector<24x24xf32> to vector<24xf32>
    %175 = vector.shape_cast %174 : vector<24xf32> to vector<24x1xf32>
    %176 = vector.broadcast %175 : vector<24x1xf32> to vector<24x24xf32>
    %177 = arith.subf %173, %176 : vector<24x24xf32>
    %178 = math.exp %177 : vector<24x24xf32>
    %cst_60 = arith.constant dense<0.000000e+00> : vector<24xf32>
    %179 = vector.multi_reduction <add>, %178, %cst_60 [1] : vector<24x24xf32> to vector<24xf32>
    %180 = vector.shape_cast %179 : vector<24xf32> to vector<24x1xf32>
    %181 = tpu.reciprocal %180 {approx = true} : vector<24x1xf32> -> vector<24x1xf32>
    %182 = vector.broadcast %181 : vector<24x1xf32> to vector<24x24xf32>
    %183 = arith.mulf %178, %182 : vector<24x24xf32>
    %184 = arith.truncf %183 : vector<24x24xf32> to vector<24x24xbf16>
    %185 = arith.truncf %166 : vector<24x32xf32> to vector<24x32xbf16>
    %cst_61 = arith.constant dense<0.000000e+00> : vector<24x32xf32>
    %186 = tpu.matmul %184, %185, %cst_61 {dimension_numbers = #tpu.dot_dimension_numbers<[1], [0], [0], [1], [0, 0, 1, 1], [], []>} : vector<24x24xbf16>, vector<24x32xbf16>, vector<24x32xf32> -> vector<24x32xf32>
    %c1_62 = arith.constant 1 : index
    %c0_63 = arith.constant 0 : index
    %c0_64 = arith.constant 0 : index
    %187 = vector.load %arg5[%c1_62, %c0_63, %c0_64] : memref<2x32x32xbf16, #tpu.memory_space<vmem>>, vector<1x32x32xbf16>
    %188 = vector.shape_cast %187 : vector<1x32x32xbf16> to vector<32x32xbf16>
    %189 = arith.truncf %186 : vector<24x32xf32> to vector<24x32xbf16>
    %cst_65 = arith.constant dense<0.000000e+00> : vector<24x32xf32>
    %190 = tpu.matmul %189, %188, %cst_65 {dimension_numbers = #tpu.dot_dimension_numbers<[1], [0], [0], [1], [0, 0, 1, 1], [], []>} : vector<24x32xbf16>, vector<32x32xbf16>, vector<24x32xf32> -> vector<24x32xf32>
    %191 = arith.addf %125, %190 : vector<24x32xf32>
    %192 = vector.broadcast %131 : vector<1x32xf32> to vector<24x32xf32>
    %193 = arith.addf %191, %192 : vector<24x32xf32>
    %cst_66 = arith.constant dense<0.000000e+00> : vector<24xf32>
    %194 = vector.multi_reduction <add>, %193, %cst_66 [1] : vector<24x32xf32> to vector<24xf32>
    %195 = vector.shape_cast %194 : vector<24xf32> to vector<24x1xf32>
    %cst_67 = arith.constant 3.200000e+01 : f32
    %196 = vector.broadcast %cst_67 : f32 to vector<24x1xf32>
    %197 = arith.divf %195, %196 : vector<24x1xf32>
    %198 = vector.broadcast %197 : vector<24x1xf32> to vector<24x32xf32>
    %199 = arith.subf %193, %198 : vector<24x32xf32>
    %200 = arith.mulf %199, %199 : vector<24x32xf32>
    %cst_68 = arith.constant dense<0.000000e+00> : vector<24xf32>
    %201 = vector.multi_reduction <add>, %200, %cst_68 [1] : vector<24x32xf32> to vector<24xf32>
    %202 = vector.shape_cast %201 : vector<24xf32> to vector<24x1xf32>
    %cst_69 = arith.constant 3.200000e+01 : f32
    %203 = vector.broadcast %cst_69 : f32 to vector<24x1xf32>
    %204 = arith.divf %202, %203 : vector<24x1xf32>
    %205 = vector.broadcast %197 : vector<24x1xf32> to vector<24x32xf32>
    %206 = arith.subf %193, %205 : vector<24x32xf32>
    %cst_70 = arith.constant 9.99999997E-7 : f32
    %207 = vector.broadcast %cst_70 : f32 to vector<24x1xf32>
    %208 = arith.addf %204, %207 : vector<24x1xf32>
    %209 = math.rsqrt %208 : vector<24x1xf32>
    %210 = vector.broadcast %209 : vector<24x1xf32> to vector<24x32xf32>
    %211 = arith.mulf %206, %210 : vector<24x32xf32>
    %212 = vector.broadcast %132 : vector<1x32xf32> to vector<24x32xf32>
    %213 = arith.mulf %211, %212 : vector<24x32xf32>
    %214 = vector.broadcast %133 : vector<1x32xf32> to vector<24x32xf32>
    %215 = arith.addf %213, %214 : vector<24x32xf32>
    %c1_71 = arith.constant 1 : index
    %c0_72 = arith.constant 0 : index
    %c0_73 = arith.constant 0 : index
    %216 = vector.load %arg6[%c1_71, %c0_72, %c0_73] : memref<2x32x128xbf16, #tpu.memory_space<vmem>>, vector<1x32x128xbf16>
    %217 = vector.shape_cast %216 : vector<1x32x128xbf16> to vector<32x128xbf16>
    %218 = arith.truncf %215 : vector<24x32xf32> to vector<24x32xbf16>
    %cst_74 = arith.constant dense<0.000000e+00> : vector<24x128xf32>
    %219 = tpu.matmul %218, %217, %cst_74 {dimension_numbers = #tpu.dot_dimension_numbers<[1], [0], [0], [1], [0, 0, 1, 1], [], []>} : vector<24x32xbf16>, vector<32x128xbf16>, vector<24x128xf32> -> vector<24x128xf32>
    %220 = vector.broadcast %134 : vector<1x128xf32> to vector<24x128xf32>
    %221 = arith.addf %219, %220 : vector<24x128xf32>
    %cst_75 = arith.constant 5.000000e-01 : f32
    %222 = vector.broadcast %cst_75 : f32 to vector<24x128xf32>
    %223 = arith.mulf %222, %221 : vector<24x128xf32>
    %cst_76 = arith.constant 4.471500e-02 : f32
    %224 = vector.broadcast %cst_76 : f32 to vector<24x128xf32>
    %225 = arith.mulf %224, %221 : vector<24x128xf32>
    %226 = arith.mulf %225, %221 : vector<24x128xf32>
    %227 = arith.mulf %226, %221 : vector<24x128xf32>
    %228 = arith.addf %221, %227 : vector<24x128xf32>
    %cst_77 = arith.constant 0.797884583 : f32
    %229 = vector.broadcast %cst_77 : f32 to vector<24x128xf32>
    %230 = arith.mulf %229, %228 : vector<24x128xf32>
    %231 = math.tanh %230 : vector<24x128xf32>
    %cst_78 = arith.constant 1.000000e+00 : f32
    %232 = vector.broadcast %cst_78 : f32 to vector<24x128xf32>
    %233 = arith.addf %232, %231 : vector<24x128xf32>
    %234 = arith.mulf %223, %233 : vector<24x128xf32>
    %c1_79 = arith.constant 1 : index
    %c0_80 = arith.constant 0 : index
    %c0_81 = arith.constant 0 : index
    %235 = vector.load %arg7[%c1_79, %c0_80, %c0_81] : memref<2x128x32xbf16, #tpu.memory_space<vmem>>, vector<1x128x32xbf16>
    %236 = vector.shape_cast %235 : vector<1x128x32xbf16> to vector<128x32xbf16>
    %237 = arith.truncf %234 : vector<24x128xf32> to vector<24x128xbf16>
    %cst_82 = arith.constant dense<0.000000e+00> : vector<24x32xf32>
    %238 = tpu.matmul %237, %236, %cst_82 {dimension_numbers = #tpu.dot_dimension_numbers<[1], [0], [0], [1], [0, 0, 1, 1], [], []>} : vector<24x128xbf16>, vector<128x32xbf16>, vector<24x32xf32> -> vector<24x32xf32>
    %239 = arith.addf %193, %238 : vector<24x32xf32>
    %240 = vector.broadcast %135 : vector<1x32xf32> to vector<24x32xf32>
    %241 = arith.addf %239, %240 : vector<24x32xf32>
    %242 = vector.extract_strided_slice %241 {offsets = [1, 0], sizes = [16, 32], strides = [1, 1]} : vector<24x32xf32> to vector<16x32xf32>
    %243 = vector.extract_strided_slice %242 {offsets = [0, 0], sizes = [1, 32], strides = [1, 1]} : vector<16x32xf32> to vector<1x32xf32>
    %244 = vector.extract_strided_slice %242 {offsets = [2, 0], sizes = [1, 32], strides = [1, 1]} : vector<16x32xf32> to vector<1x32xf32>
    %245 = vector.extract_strided_slice %242 {offsets = [8, 0], sizes = [1, 32], strides = [1, 1]} : vector<16x32xf32> to vector<1x32xf32>
    %246 = vector.extract_strided_slice %242 {offsets = [10, 0], sizes = [1, 32], strides = [1, 1]} : vector<16x32xf32> to vector<1x32xf32>
    %247 = tpu.concatenate %243, %244, %245, %246 in 0 : vector<1x32xf32>, vector<1x32xf32>, vector<1x32xf32>, vector<1x32xf32> -> vector<4x32xf32>
    %248 = vector.extract_strided_slice %242 {offsets = [1, 0], sizes = [1, 32], strides = [1, 1]} : vector<16x32xf32> to vector<1x32xf32>
    %249 = vector.extract_strided_slice %242 {offsets = [3, 0], sizes = [1, 32], strides = [1, 1]} : vector<16x32xf32> to vector<1x32xf32>
    %250 = vector.extract_strided_slice %242 {offsets = [9, 0], sizes = [1, 32], strides = [1, 1]} : vector<16x32xf32> to vector<1x32xf32>
    %251 = vector.extract_strided_slice %242 {offsets = [11, 0], sizes = [1, 32], strides = [1, 1]} : vector<16x32xf32> to vector<1x32xf32>
    %252 = tpu.concatenate %248, %249, %250, %251 in 0 : vector<1x32xf32>, vector<1x32xf32>, vector<1x32xf32>, vector<1x32xf32> -> vector<4x32xf32>
    %253 = vector.extract_strided_slice %242 {offsets = [4, 0], sizes = [1, 32], strides = [1, 1]} : vector<16x32xf32> to vector<1x32xf32>
    %254 = vector.extract_strided_slice %242 {offsets = [6, 0], sizes = [1, 32], strides = [1, 1]} : vector<16x32xf32> to vector<1x32xf32>
    %255 = vector.extract_strided_slice %242 {offsets = [12, 0], sizes = [1, 32], strides = [1, 1]} : vector<16x32xf32> to vector<1x32xf32>
    %256 = vector.extract_strided_slice %242 {offsets = [14, 0], sizes = [1, 32], strides = [1, 1]} : vector<16x32xf32> to vector<1x32xf32>
    %257 = tpu.concatenate %253, %254, %255, %256 in 0 : vector<1x32xf32>, vector<1x32xf32>, vector<1x32xf32>, vector<1x32xf32> -> vector<4x32xf32>
    %258 = vector.extract_strided_slice %242 {offsets = [5, 0], sizes = [1, 32], strides = [1, 1]} : vector<16x32xf32> to vector<1x32xf32>
    %259 = vector.extract_strided_slice %242 {offsets = [7, 0], sizes = [1, 32], strides = [1, 1]} : vector<16x32xf32> to vector<1x32xf32>
    %260 = vector.extract_strided_slice %242 {offsets = [13, 0], sizes = [1, 32], strides = [1, 1]} : vector<16x32xf32> to vector<1x32xf32>
    %261 = vector.extract_strided_slice %242 {offsets = [15, 0], sizes = [1, 32], strides = [1, 1]} : vector<16x32xf32> to vector<1x32xf32>
    %262 = tpu.concatenate %258, %259, %260, %261 in 0 : vector<1x32xf32>, vector<1x32xf32>, vector<1x32xf32>, vector<1x32xf32> -> vector<4x32xf32>
    %263 = tpu.concatenate %247, %252, %257, %262 in 1 : vector<4x32xf32>, vector<4x32xf32>, vector<4x32xf32>, vector<4x32xf32> -> vector<4x128xf32>
    %c0_83 = arith.constant 0 : index
    %c0_84 = arith.constant 0 : index
    %264 = vector.load %arg9[%c0_83, %c0_84] : memref<2x128xf32, #tpu.memory_space<vmem>>, vector<1x128xf32>
    %c1_85 = arith.constant 1 : index
    %c0_86 = arith.constant 0 : index
    %265 = vector.load %arg9[%c1_85, %c0_86] : memref<2x128xf32, #tpu.memory_space<vmem>>, vector<1x128xf32>
    %cst_87 = arith.constant dense<0.000000e+00> : vector<4xf32>
    %266 = vector.multi_reduction <add>, %263, %cst_87 [1] : vector<4x128xf32> to vector<4xf32>
    %267 = vector.shape_cast %266 : vector<4xf32> to vector<4x1xf32>
    %cst_88 = arith.constant 1.280000e+02 : f32
    %268 = vector.broadcast %cst_88 : f32 to vector<4x1xf32>
    %269 = arith.divf %267, %268 : vector<4x1xf32>
    %270 = vector.broadcast %269 : vector<4x1xf32> to vector<4x128xf32>
    %271 = arith.subf %263, %270 : vector<4x128xf32>
    %272 = arith.mulf %271, %271 : vector<4x128xf32>
    %cst_89 = arith.constant dense<0.000000e+00> : vector<4xf32>
    %273 = vector.multi_reduction <add>, %272, %cst_89 [1] : vector<4x128xf32> to vector<4xf32>
    %274 = vector.shape_cast %273 : vector<4xf32> to vector<4x1xf32>
    %cst_90 = arith.constant 1.280000e+02 : f32
    %275 = vector.broadcast %cst_90 : f32 to vector<4x1xf32>
    %276 = arith.divf %274, %275 : vector<4x1xf32>
    %277 = vector.broadcast %269 : vector<4x1xf32> to vector<4x128xf32>
    %278 = arith.subf %263, %277 : vector<4x128xf32>
    %cst_91 = arith.constant 9.99999997E-7 : f32
    %279 = vector.broadcast %cst_91 : f32 to vector<4x1xf32>
    %280 = arith.addf %276, %279 : vector<4x1xf32>
    %281 = math.rsqrt %280 : vector<4x1xf32>
    %282 = vector.broadcast %281 : vector<4x1xf32> to vector<4x128xf32>
    %283 = arith.mulf %278, %282 : vector<4x128xf32>
    %284 = vector.broadcast %264 : vector<1x128xf32> to vector<4x128xf32>
    %285 = arith.mulf %283, %284 : vector<4x128xf32>
    %286 = vector.broadcast %265 : vector<1x128xf32> to vector<4x128xf32>
    %287 = arith.addf %285, %286 : vector<4x128xf32>
    %c0_92 = arith.constant 0 : index
    %c0_93 = arith.constant 0 : index
    %288 = vector.load %arg10[%c0_92, %c0_93] : memref<128x64xbf16, #tpu.memory_space<vmem>>, vector<128x64xbf16>
    %289 = arith.truncf %287 : vector<4x128xf32> to vector<4x128xbf16>
    %cst_94 = arith.constant dense<0.000000e+00> : vector<4x64xf32>
    %290 = tpu.matmul %289, %288, %cst_94 {dimension_numbers = #tpu.dot_dimension_numbers<[1], [0], [0], [1], [0, 0, 1, 1], [], []>} : vector<4x128xbf16>, vector<128x64xbf16>, vector<4x64xf32> -> vector<4x64xf32>
    %c0_95 = arith.constant 0 : index
    %c0_96 = arith.constant 0 : index
    %291 = vector.load %arg12[%c0_95, %c0_96] : memref<2x64xf32, #tpu.memory_space<vmem>>, vector<1x64xf32>
    %292 = vector.broadcast %291 : vector<1x64xf32> to vector<4x64xf32>
    %293 = arith.addf %290, %292 : vector<4x64xf32>
    %cst_97 = arith.constant 5.000000e-01 : f32
    %294 = vector.broadcast %cst_97 : f32 to vector<4x64xf32>
    %295 = arith.mulf %294, %293 : vector<4x64xf32>
    %cst_98 = arith.constant 4.471500e-02 : f32
    %296 = vector.broadcast %cst_98 : f32 to vector<4x64xf32>
    %297 = arith.mulf %296, %293 : vector<4x64xf32>
    %298 = arith.mulf %297, %293 : vector<4x64xf32>
    %299 = arith.mulf %298, %293 : vector<4x64xf32>
    %300 = arith.addf %293, %299 : vector<4x64xf32>
    %cst_99 = arith.constant 0.797884583 : f32
    %301 = vector.broadcast %cst_99 : f32 to vector<4x64xf32>
    %302 = arith.mulf %301, %300 : vector<4x64xf32>
    %303 = math.tanh %302 : vector<4x64xf32>
    %cst_100 = arith.constant 1.000000e+00 : f32
    %304 = vector.broadcast %cst_100 : f32 to vector<4x64xf32>
    %305 = arith.addf %304, %303 : vector<4x64xf32>
    %306 = arith.mulf %295, %305 : vector<4x64xf32>
    %c0_101 = arith.constant 0 : index
    %c0_102 = arith.constant 0 : index
    %307 = vector.load %arg11[%c0_101, %c0_102] : memref<64x64xbf16, #tpu.memory_space<vmem>>, vector<64x64xbf16>
    %308 = arith.truncf %306 : vector<4x64xf32> to vector<4x64xbf16>
    %cst_103 = arith.constant dense<0.000000e+00> : vector<4x64xf32>
    %309 = tpu.matmul %308, %307, %cst_103 {dimension_numbers = #tpu.dot_dimension_numbers<[1], [0], [0], [1], [0, 0, 1, 1], [], []>} : vector<4x64xbf16>, vector<64x64xbf16>, vector<4x64xf32> -> vector<4x64xf32>
    %c1_104 = arith.constant 1 : index
    %c0_105 = arith.constant 0 : index
    %310 = vector.load %arg12[%c1_104, %c0_105] : memref<2x64xf32, #tpu.memory_space<vmem>>, vector<1x64xf32>
    %311 = vector.broadcast %310 : vector<1x64xf32> to vector<4x64xf32>
    %312 = arith.addf %309, %311 : vector<4x64xf32>
    %313 = vector.extract_strided_slice %312 {offsets = [0, 0], sizes = [1, 64], strides = [1, 1]} : vector<4x64xf32> to vector<1x64xf32>
    %314 = vector.extract_strided_slice %312 {offsets = [1, 0], sizes = [1, 64], strides = [1, 1]} : vector<4x64xf32> to vector<1x64xf32>
    %315 = vector.extract_strided_slice %312 {offsets = [2, 0], sizes = [1, 64], strides = [1, 1]} : vector<4x64xf32> to vector<1x64xf32>
    %316 = vector.extract_strided_slice %312 {offsets = [3, 0], sizes = [1, 64], strides = [1, 1]} : vector<4x64xf32> to vector<1x64xf32>
    %317 = tpu.concatenate %313, %314, %315, %316 in 1 : vector<1x64xf32>, vector<1x64xf32>, vector<1x64xf32>, vector<1x64xf32> -> vector<1x256xf32>
    %c0_106 = arith.constant 0 : index
    %c0_107 = arith.constant 0 : index
    %c0_108 = arith.constant 0 : index
    %318 = vector.load %arg13[%c0_106, %c0_107, %c0_108] : memref<1x1x256xf32, #tpu.memory_space<vmem>>, vector<1x1x256xf32>
    %319 = vector.shape_cast %318 : vector<1x1x256xf32> to vector<1x256xf32>
    %320 = vector.shape_cast %317 : vector<1x256xf32> to vector<1x1x256xf32>
    tpu.vector_store %arg13[%c0_106, %c0_107, %c0_108], %320 {strides = array<i32>} : memref<1x1x256xf32, #tpu.memory_space<vmem>>, vector<1x1x256xf32>,
    return
  }
  func.func @transform_0(%arg0: i32) -> (i32, i32, i32) {
    %c0_i32 = arith.constant 0 : i32
    %c0_i32_0 = arith.constant 0 : i32
    %c0_i32_1 = arith.constant 0 : i32
    return %arg0, %c0_i32, %c0_i32_0 : i32, i32, i32
  }
  func.func @transform_1(%arg0: i32) -> (i32, i32) {
    %c0_i32 = arith.constant 0 : i32
    %c0_i32_0 = arith.constant 0 : i32
    %c0_i32_1 = arith.constant 0 : i32
    return %c0_i32, %c0_i32_0 : i32, i32
  }
  func.func @transform_2(%arg0: i32) -> (i32, i32) {
    %c0_i32 = arith.constant 0 : i32
    %c0_i32_0 = arith.constant 0 : i32
    %c0_i32_1 = arith.constant 0 : i32
    return %c0_i32, %c0_i32_0 : i32, i32
  }
  func.func @transform_3(%arg0: i32) -> (i32, i32, i32) {
    %c0_i32 = arith.constant 0 : i32
    %c0_i32_0 = arith.constant 0 : i32
    %c0_i32_1 = arith.constant 0 : i32
    %c0_i32_2 = arith.constant 0 : i32
    return %c0_i32, %c0_i32_0, %c0_i32_1 : i32, i32, i32
  }
  func.func @transform_4(%arg0: i32) -> (i32, i32, i32) {
    %c0_i32 = arith.constant 0 : i32
    %c0_i32_0 = arith.constant 0 : i32
    %c0_i32_1 = arith.constant 0 : i32
    %c0_i32_2 = arith.constant 0 : i32
    return %c0_i32, %c0_i32_0, %c0_i32_1 : i32, i32, i32
  }
  func.func @transform_5(%arg0: i32) -> (i32, i32, i32) {
    %c0_i32 = arith.constant 0 : i32
    %c0_i32_0 = arith.constant 0 : i32
    %c0_i32_1 = arith.constant 0 : i32
    %c0_i32_2 = arith.constant 0 : i32
    return %c0_i32, %c0_i32_0, %c0_i32_1 : i32, i32, i32
  }
  func.func @transform_6(%arg0: i32) -> (i32, i32, i32) {
    %c0_i32 = arith.constant 0 : i32
    %c0_i32_0 = arith.constant 0 : i32
    %c0_i32_1 = arith.constant 0 : i32
    %c0_i32_2 = arith.constant 0 : i32
    return %c0_i32, %c0_i32_0, %c0_i32_1 : i32, i32, i32
  }
  func.func @transform_7(%arg0: i32) -> (i32, i32, i32) {
    %c0_i32 = arith.constant 0 : i32
    %c0_i32_0 = arith.constant 0 : i32
    %c0_i32_1 = arith.constant 0 : i32
    %c0_i32_2 = arith.constant 0 : i32
    return %c0_i32, %c0_i32_0, %c0_i32_1 : i32, i32, i32
  }
  func.func @transform_8(%arg0: i32) -> (i32, i32) {
    %c0_i32 = arith.constant 0 : i32
    %c0_i32_0 = arith.constant 0 : i32
    %c0_i32_1 = arith.constant 0 : i32
    return %c0_i32, %c0_i32_0 : i32, i32
  }
  func.func @transform_9(%arg0: i32) -> (i32, i32) {
    %c0_i32 = arith.constant 0 : i32
    %c0_i32_0 = arith.constant 0 : i32
    %c0_i32_1 = arith.constant 0 : i32
    return %c0_i32, %c0_i32_0 : i32, i32
  }
  func.func @transform_10(%arg0: i32) -> (i32, i32) {
    %c0_i32 = arith.constant 0 : i32
    %c0_i32_0 = arith.constant 0 : i32
    %c0_i32_1 = arith.constant 0 : i32
    return %c0_i32, %c0_i32_0 : i32, i32
  }
  func.func @transform_11(%arg0: i32) -> (i32, i32) {
    %c0_i32 = arith.constant 0 : i32
    %c0_i32_0 = arith.constant 0 : i32
    %c0_i32_1 = arith.constant 0 : i32
    return %c0_i32, %c0_i32_0 : i32, i32
  }
  func.func @transform_12(%arg0: i32) -> (i32, i32, i32) {
    %c0_i32 = arith.constant 0 : i32
    %c0_i32_0 = arith.constant 0 : i32
    %c0_i32_1 = arith.constant 0 : i32
    return %arg0, %c0_i32, %c0_i32_0 : i32, i32, i32
  }
}

</mosaic_0001>

<llo_original>
// kernel: forward.1
$region0: #{forward.1}
  #allocation0 [shape = 'u32[]', space=smem, size = 0x4, offset = 0x4, fixed_abs, tag = 'smem constant byte address 0x4 - core index']
  #allocation1 [shape = 'u32[144,128]{1,0:T(1,128)}', space=vmem, size = 0x12000, scoped, tag = 'internal scratch']
  %s0 = inlined_call_operand.vmem [shape: f32[2,24,48], index: 0, kind: input, shape index: {}]
  %s1 = inlined_call_operand.vmem [shape: bf16[48,32], index: 1, kind: input, shape index: {}]
  %s2 = inlined_call_operand.vmem [shape: f32[24,32], index: 2, kind: input, shape index: {}]
  %s3 = inlined_call_operand.vmem [shape: bf16[2,32,96], index: 3, kind: input, shape index: {}]
  %s4 = inlined_call_operand.vmem [shape: bf16[2,32,32], index: 4, kind: input, shape index: {}]
  %s5 = inlined_call_operand.vmem [shape: bf16[2,32,128], index: 5, kind: input, shape index: {}]
  %s6 = inlined_call_operand.vmem [shape: bf16[2,128,32], index: 6, kind: input, shape index: {}]
  %s7 = inlined_call_operand.vmem [shape: f32[2,8,128], index: 7, kind: input, shape index: {}]
  %s8 = inlined_call_operand.vmem [shape: f32[2,128], index: 8, kind: input, shape index: {}]
  %s9 = inlined_call_operand.vmem [shape: bf16[128,64], index: 9, kind: input, shape index: {}]
  %s10 = inlined_call_operand.vmem [shape: bf16[64,64], index: 10, kind: input, shape index: {}]
  %s11 = inlined_call_operand.vmem [shape: f32[2,64], index: 11, kind: input, shape index: {}]
  %s12 = inlined_call_operand.vmem [shape: f32[2,1,256], index: 12, kind: output, shape index: {}]
  %s13 = sld [smem:[#allocation0]]
  $region81: #{forward.1} parent=0
    _
  %s15 = ssub.s32 1, %s13
  %s16 = scalar_select 0, %s15, %s13
  loop: start=0, step=1, limit=4
  $region2: #{forward.1} parent=0 // loop_pre_header
    _
  $region3: #{forward.1} parent=0 // loop_header
    %s18 = sphi 0, %s22
    %p19 = scmp.ge.s32.totalorder %s18, 4
    %s28 = sphi 0, %s30
    %s31 = sphi 0, %s28
    %s32 = sphi 0, %s31
    %s48 = sphi 0, %s32
    %s52 = sphi 0, %s52
    %s54 = sphi 0, %s52
    %s55 = sphi 0, %s54
    %s69 = sphi 0, %s55
    %s73 = sphi 0, %s73
    %s75 = sphi 0, %s73
    %s76 = sphi 0, %s75
    %s90 = sphi 0, %s76
    %s94 = sphi 0, %s94
    %s96 = sphi 0, %s94
    %s97 = sphi 0, %s96
    %s111 = sphi 0, %s97
    %s115 = sphi 0, %s115
    %s117 = sphi 0, %s115
    %s118 = sphi 0, %s117
    %s132 = sphi 0, %s118
    %s136 = sphi 0, %s136
    %s138 = sphi 0, %s136
    %s139 = sphi 0, %s138
    %s153 = sphi 0, %s139
    %s157 = sphi 0, %s157
    %s159 = sphi 0, %s157
    %s160 = sphi 0, %s159
    %s174 = sphi 0, %s160
    %s178 = sphi 0, %s178
    %s180 = sphi 0, %s178
    %s181 = sphi 0, %s180
    %s195 = sphi 0, %s181
    %s199 = sphi 0, %s199
    %s201 = sphi 0, %s199
    %s202 = sphi 0, %s201
    %s216 = sphi 0, %s202
    %s220 = sphi 0, %s220
    %s222 = sphi 0, %s220
    %s223 = sphi 0, %s222
    %s237 = sphi 0, %s223
    %s241 = sphi 0, %s241
    %s243 = sphi 0, %s241
    %s244 = sphi 0, %s243
    %s258 = sphi 0, %s244
    %s262 = sphi 0, %s262
    %s264 = sphi 0, %s262
    %s265 = sphi 0, %s264
    %s279 = sphi 0, %s265
    %s285 = sphi 0, %s287
    %s288 = sphi 0, %s285
    %s289 = sphi 0, %s288
    %s305 = sphi 0, %s289
  $region4: #{forward.1} parent=0 // loop_header_branch
    %21 = sbr.rel (%p19) target = $region8
  $region5: #{forward.1} parent=0 // loop_body
    %s23 = ssub.s32 %s18, 1
    %s24 = ssub.s32 %s18, 2
    %s25 = sadd.s32 %s18, 1
    %s26 = ssub.s32 %s18, %s25
    %p27 = scmp.eq.s32.totalorder %s26, 0
    %s29 = sadd.s32 %s28, 1
    %s30 = scalar_select %p27, %s28, %s29
    %p33 = pneg %p27
    %p34 = scmp.eq.s32.totalorder %s18, 1
    %p35 = por %p33, %p34
    %p36 = scmp.ne.s32.totalorder %s28, %s31
    %p37 = scmp.eq.s32.totalorder %s18, 0
    %p38 = por %p36, %p37
    %p39 = scmp.ne.s32.totalorder %s28, %s31
    %p40 = scmp.eq.s32.totalorder %s23, 1
    %p41 = por %p39, %p40
    %p42 = scmp.ne.s32.totalorder %s31, %s32
    %p43 = scmp.eq.s32.totalorder %s23, 0
    %p44 = por %p42, %p43
    %p45 = scmp.ne.s32.totalorder %s31, %s32
    %p46 = scmp.eq.s32.totalorder %s24, 1
    %p47 = por %p45, %p46
    %p49 = scmp.ne.s32.totalorder %s32, %s48
    %p50 = scmp.eq.s32.totalorder %s24, 0
    %p51 = por %p49, %p50
    %s53 = sadd.s32 %s52, 1
    %p56 = scmp.eq.s32.totalorder %s18, 1
    %p57 = scmp.ne.s32.totalorder %s52, %s54
    %p58 = scmp.eq.s32.totalorder %s18, 0
    %p59 = por %p57, %p58
    %p60 = scmp.ne.s32.totalorder %s52, %s54
    %p61 = scmp.eq.s32.totalorder %s23, 1
    %p62 = por %p60, %p61
    %p63 = scmp.ne.s32.totalorder %s54, %s55
    %p64 = scmp.eq.s32.totalorder %s23, 0
    %p65 = por %p63, %p64
    %p66 = scmp.ne.s32.totalorder %s54, %s55
    %p67 = scmp.eq.s32.totalorder %s24, 1
    %p68 = por %p66, %p67
    %p70 = scmp.ne.s32.totalorder %s55, %s69
    %p71 = scmp.eq.s32.totalorder %s24, 0
    %p72 = por %p70, %p71
    %s74 = sadd.s32 %s73, 1
    %p77 = scmp.eq.s32.totalorder %s18, 1
    %p78 = scmp.ne.s32.totalorder %s73, %s75
    %p79 = scmp.eq.s32.totalorder %s18, 0
    %p80 = por %p78, %p79
    %p81 = scmp.ne.s32.totalorder %s73, %s75
    %p82 = scmp.eq.s32.totalorder %s23, 1
    %p83 = por %p81, %p82
    %p84 = scmp.ne.s32.totalorder %s75, %s76
    %p85 = scmp.eq.s32.totalorder %s23, 0
    %p86 = por %p84, %p85
    %p87 = scmp.ne.s32.totalorder %s75, %s76
    %p88 = scmp.eq.s32.totalorder %s24, 1
    %p89 = por %p87, %p88
    %p91 = scmp.ne.s32.totalorder %s76, %s90
    %p92 = scmp.eq.s32.totalorder %s24, 0
    %p93 = por %p91, %p92
    %s95 = sadd.s32 %s94, 1
    %p98 = scmp.eq.s32.totalorder %s18, 1
    %p99 = scmp.ne.s32.totalorder %s94, %s96
    %p100 = scmp.eq.s32.totalorder %s18, 0
    %p101 = por %p99, %p100
    %p102 = scmp.ne.s32.totalorder %s94, %s96
    %p103 = scmp.eq.s32.totalorder %s23, 1
    %p104 = por %p102, %p103
    %p105 = scmp.ne.s32.totalorder %s96, %s97
    %p106 = scmp.eq.s32.totalorder %s23, 0
    %p107 = por %p105, %p106
    %p108 = scmp.ne.s32.totalorder %s96, %s97
    %p109 = scmp.eq.s32.totalorder %s24, 1
    %p110 = por %p108, %p109
    %p112 = scmp.ne.s32.totalorder %s97, %s111
    %p113 = scmp.eq.s32.totalorder %s24, 0
    %p114 = por %p112, %p113
    %s116 = sadd.s32 %s115, 1
    %p119 = scmp.eq.s32.totalorder %s18, 1
    %p120 = scmp.ne.s32.totalorder %s115, %s117
    %p121 = scmp.eq.s32.totalorder %s18, 0
    %p122 = por %p120, %p121
    %p123 = scmp.ne.s32.totalorder %s115, %s117
    %p124 = scmp.eq.s32.totalorder %s23, 1
    %p125 = por %p123, %p124
    %p126 = scmp.ne.s32.totalorder %s117, %s118
    %p127 = scmp.eq.s32.totalorder %s23, 0
    %p128 = por %p126, %p127
    %p129 = scmp.ne.s32.totalorder %s117, %s118
    %p130 = scmp.eq.s32.totalorder %s24, 1
    %p131 = por %p129, %p130
    %p133 = scmp.ne.s32.totalorder %s118, %s132
    %p134 = scmp.eq.s32.totalorder %s24, 0
    %p135 = por %p133, %p134
    %s137 = sadd.s32 %s136, 1
    %p140 = scmp.eq.s32.totalorder %s18, 1
    %p141 = scmp.ne.s32.totalorder %s136, %s138
    %p142 = scmp.eq.s32.totalorder %s18, 0
    %p143 = por %p141, %p142
    %p144 = scmp.ne.s32.totalorder %s136, %s138
    %p145 = scmp.eq.s32.totalorder %s23, 1
    %p146 = por %p144, %p145
    %p147 = scmp.ne.s32.totalorder %s138, %s139
    %p148 = scmp.eq.s32.totalorder %s23, 0
    %p149 = por %p147, %p148
    %p150 = scmp.ne.s32.totalorder %s138, %s139
    %p151 = scmp.eq.s32.totalorder %s24, 1
    %p152 = por %p150, %p151
    %p154 = scmp.ne.s32.totalorder %s139, %s153
    %p155 = scmp.eq.s32.totalorder %s24, 0
    %p156 = por %p154, %p155
    %s158 = sadd.s32 %s157, 1
    %p161 = scmp.eq.s32.totalorder %s18, 1
    %p162 = scmp.ne.s32.totalorder %s157, %s159
    %p163 = scmp.eq.s32.totalorder %s18, 0
    %p164 = por %p162, %p163
    %p165 = scmp.ne.s32.totalorder %s157, %s159
    %p166 = scmp.eq.s32.totalorder %s23, 1
    %p167 = por %p165, %p166
    %p168 = scmp.ne.s32.totalorder %s159, %s160
    %p169 = scmp.eq.s32.totalorder %s23, 0
    %p170 = por %p168, %p169
    %p171 = scmp.ne.s32.totalorder %s159, %s160
    %p172 = scmp.eq.s32.totalorder %s24, 1
    %p173 = por %p171, %p172
    %p175 = scmp.ne.s32.totalorder %s160, %s174
    %p176 = scmp.eq.s32.totalorder %s24, 0
    %p177 = por %p175, %p176
    %s179 = sadd.s32 %s178, 1
    %p182 = scmp.eq.s32.totalorder %s18, 1
    %p183 = scmp.ne.s32.totalorder %s178, %s180
    %p184 = scmp.eq.s32.totalorder %s18, 0
    %p185 = por %p183, %p184
    %p186 = scmp.ne.s32.totalorder %s178, %s180
    %p187 = scmp.eq.s32.totalorder %s23, 1
    %p188 = por %p186, %p187
    %p189 = scmp.ne.s32.totalorder %s180, %s181
    %p190 = scmp.eq.s32.totalorder %s23, 0
    %p191 = por %p189, %p190
    %p192 = scmp.ne.s32.totalorder %s180, %s181
    %p193 = scmp.eq.s32.totalorder %s24, 1
    %p194 = por %p192, %p193
    %p196 = scmp.ne.s32.totalorder %s181, %s195
    %p197 = scmp.eq.s32.totalorder %s24, 0
    %p198 = por %p196, %p197
    %s200 = sadd.s32 %s199, 1
    %p203 = scmp.eq.s32.totalorder %s18, 1
    %p204 = scmp.ne.s32.totalorder %s199, %s201
    %p205 = scmp.eq.s32.totalorder %s18, 0
    %p206 = por %p204, %p205
    %p207 = scmp.ne.s32.totalorder %s199, %s201
    %p208 = scmp.eq.s32.totalorder %s23, 1
    %p209 = por %p207, %p208
    %p210 = scmp.ne.s32.totalorder %s201, %s202
    %p211 = scmp.eq.s32.totalorder %s23, 0
    %p212 = por %p210, %p211
    %p213 = scmp.ne.s32.totalorder %s201, %s202
    %p214 = scmp.eq.s32.totalorder %s24, 1
    %p215 = por %p213, %p214
    %p217 = scmp.ne.s32.totalorder %s202, %s216
    %p218 = scmp.eq.s32.totalorder %s24, 0
    %p219 = por %p217, %p218
    %s221 = sadd.s32 %s220, 1
    %p224 = scmp.eq.s32.totalorder %s18, 1
    %p225 = scmp.ne.s32.totalorder %s220, %s222
    %p226 = scmp.eq.s32.totalorder %s18, 0
    %p227 = por %p225, %p226
    %p228 = scmp.ne.s32.totalorder %s220, %s222
    %p229 = scmp.eq.s32.totalorder %s23, 1
    %p230 = por %p228, %p229
    %p231 = scmp.ne.s32.totalorder %s222, %s223
    %p232 = scmp.eq.s32.totalorder %s23, 0
    %p233 = por %p231, %p232
    %p234 = scmp.ne.s32.totalorder %s222, %s223
    %p235 = scmp.eq.s32.totalorder %s24, 1
    %p236 = por %p234, %p235
    %p238 = scmp.ne.s32.totalorder %s223, %s237
    %p239 = scmp.eq.s32.totalorder %s24, 0
    %p240 = por %p238, %p239
    %s242 = sadd.s32 %s241, 1
    %p245 = scmp.eq.s32.totalorder %s18, 1
    %p246 = scmp.ne.s32.totalorder %s241, %s243
    %p247 = scmp.eq.s32.totalorder %s18, 0
    %p248 = por %p246, %p247
    %p249 = scmp.ne.s32.totalorder %s241, %s243
    %p250 = scmp.eq.s32.totalorder %s23, 1
    %p251 = por %p249, %p250
    %p252 = scmp.ne.s32.totalorder %s243, %s244
    %p253 = scmp.eq.s32.totalorder %s23, 0
    %p254 = por %p252, %p253
    %p255 = scmp.ne.s32.totalorder %s243, %s244
    %p256 = scmp.eq.s32.totalorder %s24, 1
    %p257 = por %p255, %p256
    %p259 = scmp.ne.s32.totalorder %s244, %s258
    %p260 = scmp.eq.s32.totalorder %s24, 0
    %p261 = por %p259, %p260
    %s263 = sadd.s32 %s262, 1
    %p266 = scmp.eq.s32.totalorder %s18, 1
    %p267 = scmp.ne.s32.totalorder %s262, %s264
    %p268 = scmp.eq.s32.totalorder %s18, 0
    %p269 = por %p267, %p268
    %p270 = scmp.ne.s32.totalorder %s262, %s264
    %p271 = scmp.eq.s32.totalorder %s23, 1
    %p272 = por %p270, %p271
    %p273 = scmp.ne.s32.totalorder %s264, %s265
    %p274 = scmp.eq.s32.totalorder %s23, 0
    %p275 = por %p273, %p274
    %p276 = scmp.ne.s32.totalorder %s264, %s265
    %p277 = scmp.eq.s32.totalorder %s24, 1
    %p278 = por %p276, %p277
    %p280 = scmp.ne.s32.totalorder %s265, %s279
    %p281 = scmp.eq.s32.totalorder %s24, 0
    %p282 = por %p280, %p281
    %s283 = ssub.s32 %s18, %s25
    %p284 = scmp.eq.s32.totalorder %s283, 0
    %s286 = sadd.s32 %s285, 1
    %s287 = scalar_select %p284, %s285, %s286
    %p290 = pneg %p284
    %p291 = scmp.eq.s32.totalorder %s18, 1
    %p292 = por %p290, %p291
    %p293 = scmp.ne.s32.totalorder %s285, %s288
    %p294 = scmp.eq.s32.totalorder %s18, 0
    %p295 = por %p293, %p294
    %p296 = scmp.ne.s32.totalorder %s285, %s288
    %p297 = scmp.eq.s32.totalorder %s23, 1
    %p298 = por %p296, %p297
    %p299 = scmp.ne.s32.totalorder %s288, %s289
    %p300 = scmp.eq.s32.totalorder %s23, 0
    %p301 = por %p299, %p300
    %p302 = scmp.ne.s32.totalorder %s288, %s289
    %p303 = scmp.eq.s32.totalorder %s24, 1
    %p304 = por %p302, %p303
    %p306 = scmp.ne.s32.totalorder %s289, %s305
    %p307 = scmp.eq.s32.totalorder %s24, 0
    %p308 = por %p306, %p307
    %p309 = scmp.le.s32.totalorder 1, %s18
    %p310 = scmp.lt.s32.totalorder %s18, 3
    %p311 = pnand %p309, %p310
    %p312 = pneg %p311
    // Predicated region
    $region9: #{forward.1} parent=5 // pred_check
      _
    $region10: #{forward.1} parent=5 // pred_check_branch
      %314 = sbr.rel (%p311) target = $region12
    $region11: #{forward.1} parent=5 // pred_region
      %s315 = ssub.s32 %s18, 1
      // Predicated region
      $region13: #{forward.1} parent=11 // pred_check
        %p316 = pneg %p65
      $region14: #{forward.1} parent=11 // pred_check_branch
        %318 = sbr.rel (%p316) target = $region16
      $region15: #{forward.1} parent=11 // pred_region
        _
      $region16: #{forward.1} parent=11 // pred_fallthru
        _
      // Predicated region
      $region17: #{forward.1} parent=11 // pred_check
        %p319 = pneg %p86
      $region18: #{forward.1} parent=11 // pred_check_branch
        %321 = sbr.rel (%p319) target = $region20
      $region19: #{forward.1} parent=11 // pred_region
        _
      $region20: #{forward.1} parent=11 // pred_fallthru
        _
      // Predicated region
      $region21: #{forward.1} parent=11 // pred_check
        %p322 = pneg %p107
      $region22: #{forward.1} parent=11 // pred_check_branch
        %324 = sbr.rel (%p322) target = $region24
      $region23: #{forward.1} parent=11 // pred_region
        _
      $region24: #{forward.1} parent=11 // pred_fallthru
        _
      // Predicated region
      $region25: #{forward.1} parent=11 // pred_check
        %p325 = pneg %p128
      $region26: #{forward.1} parent=11 // pred_check_branch
        %327 = sbr.rel (%p325) target = $region28
      $region27: #{forward.1} parent=11 // pred_region
        _
      $region28: #{forward.1} parent=11 // pred_fallthru
        _
      // Predicated region
      $region29: #{forward.1} parent=11 // pred_check
        %p328 = pneg %p149
      $region30: #{forward.1} parent=11 // pred_check_branch
        %330 = sbr.rel (%p328) target = $region32
      $region31: #{forward.1} parent=11 // pred_region
        _
      $region32: #{forward.1} parent=11 // pred_fallthru
        _
      // Predicated region
      $region33: #{forward.1} parent=11 // pred_check
        %p331 = pneg %p170
      $region34: #{forward.1} parent=11 // pred_check_branch
        %333 = sbr.rel (%p331) target = $region36
      $region35: #{forward.1} parent=11 // pred_region
        _
      $region36: #{forward.1} parent=11 // pred_fallthru
        _
      // Predicated region
      $region37: #{forward.1} parent=11 // pred_check
        %p334 = pneg %p191
      $region38: #{forward.1} parent=11 // pred_check_branch
        %336 = sbr.rel (%p334) target = $region40
      $region39: #{forward.1} parent=11 // pred_region
        _
      $region40: #{forward.1} parent=11 // pred_fallthru
        _
      // Predicated region
      $region41: #{forward.1} parent=11 // pred_check
        %p337 = pneg %p212
      $region42: #{forward.1} parent=11 // pred_check_branch
        %339 = sbr.rel (%p337) target = $region44
      $region43: #{forward.1} parent=11 // pred_region
        _
      $region44: #{forward.1} parent=11 // pred_fallthru
        _
      // Predicated region
      $region45: #{forward.1} parent=11 // pred_check
        %p340 = pneg %p233
      $region46: #{forward.1} parent=11 // pred_check_branch
        %342 = sbr.rel (%p340) target = $region48
      $region47: #{forward.1} parent=11 // pred_region
        _
      $region48: #{forward.1} parent=11 // pred_fallthru
        _
      // Predicated region
      $region49: #{forward.1} parent=11 // pred_check
        %p343 = pneg %p254
      $region50: #{forward.1} parent=11 // pred_check_branch
        %345 = sbr.rel (%p343) target = $region52
      $region51: #{forward.1} parent=11 // pred_region
        _
      $region52: #{forward.1} parent=11 // pred_fallthru
        _
      // Predicated region
      $region53: #{forward.1} parent=11 // pred_check
        %p346 = pneg %p275
      $region54: #{forward.1} parent=11 // pred_check_branch
        %348 = sbr.rel (%p346) target = $region56
      $region55: #{forward.1} parent=11 // pred_region
        _
      $region56: #{forward.1} parent=11 // pred_fallthru
        _
    $region12: #{forward.1} parent=5 // pred_fallthru
      _
    %p349 = scmp.lt.s32.totalorder %s18, 2
    // Predicated region
    $region57: #{forward.1} parent=5 // pred_check
      %p350 = pneg %p349
    $region58: #{forward.1} parent=5 // pred_check_branch
      %352 = sbr.rel (%p350) target = $region60
    $region59: #{forward.1} parent=5 // pred_region
      // Predicated region
      $region61: #{forward.1} parent=59 // pred_check
        %p353 = pneg %p38
      $region62: #{forward.1} parent=59 // pred_check_branch
        %355 = sbr.rel (%p353) target = $region64
      $region63: #{forward.1} parent=59 // pred_region
        %p356 = scmp.lt.s32.totalorder %s18, 1
        %s357 = scalar_select %p356, %s18, 1
        %s358 = smul.addr %s357, 3
        %s359 = smul.addr %s358, 8
        %s360 = scalar_lea.vmem %s0, %s359
      $region64: #{forward.1} parent=59 // pred_fallthru
        _
    $region60: #{forward.1} parent=5 // pred_fallthru
      _
    %p361 = scmp.le.s32.totalorder 1, %s18
    %p362 = scmp.lt.s32.totalorder %s18, 3
    %p363 = pnand %p361, %p362
    %p364 = pneg %p363
    // Predicated region
    $region65: #{forward.1} parent=5 // pred_check
      _
    $region66: #{forward.1} parent=5 // pred_check_branch
      %366 = sbr.rel (%p363) target = $region68
    $region67: #{forward.1} parent=5 // pred_region
      %s367 = ssub.s32 %s18, 1
      %p368 = scmp.lt.s32.totalorder %s23, 1
      %s369 = scalar_select %p368, %s23, 1
      %s370 = smul.addr %s369, 3
      %s371 = smul.addr %s370, 8
      %s372 = scalar_lea.vmem %s0, %s371
      %p373 = pneg %p44
      %p374 = pneg %p41
      %p375 = pneg %p65
      %p376 = pneg %p62
      %p377 = pneg %p86
      %p378 = pneg %p83
      %p379 = pneg %p107
      %p380 = pneg %p104
      %p381 = pneg %p128
      %p382 = pneg %p125
      %p383 = pneg %p149
      %p384 = pneg %p146
      %p385 = pneg %p170
      %p386 = pneg %p167
      %p387 = pneg %p191
      %p388 = pneg %p188
      %p389 = pneg %p212
      %p390 = pneg %p209
      %p391 = pneg %p233
      %p392 = pneg %p230
      %p393 = pneg %p254
      %p394 = pneg %p251
      %p395 = pneg %p275
      %p396 = pneg %p272
      %p397 = pneg %p301
      %p398 = pneg %p298
      %p399 = scmp.lt.s32.totalorder %s23, 1
      %s400 = scalar_select %p399, %s23, 1
      %s401 = smul.addr %s400, 2
      %s402 = scalar_lea.vmem %s12, %s401
      %p403 = scmp.lt.s32.totalorder %s23, 1
      %s404 = scalar_select %p403, %s23, 1
      %s405 = smul.addr %s404, 3
      %s406 = smul.addr %s405, 8
      %s407 = scalar_lea.vmem %s0, %s406
      %p408 = scmp.lt.s32.totalorder %s23, 1
      %s409 = scalar_select %p408, %s23, 1
      %s410 = smul.addr %s409, 2
      %s411 = scalar_lea.vmem %s12, %s410
      %v413 = vld [vmem:[%s407] sm:$0xff]
      %v414 = vld [vmem:[%s407 + $0x8] sm:$0xff]
      %v415 = vld [vmem:[%s407 + $0x10] sm:$0xff]
      %v416 = vld [vmem:[%s1] sm:$0xf]
      %v417 = vld [vmem:[%s1 + $0x4] sm:$0xf]
      %v418 = vld [vmem:[%s1 + $0x8] sm:$0xf]
      %v419 = vld [vmem:[%s1 + $0xc] sm:$0xf]
      %v420 = vld [vmem:[%s1 + $0x10] sm:$0xf]
      %v421 = vld [vmem:[%s1 + $0x14] sm:$0xf]
      %v422 = vpack.c.bf16 %v414, %v413
      %v423 = vpack.c.bf16 %v415, %v415
      %v424 = vld [vmem:[%s2] sm:$0xff]
      %v425 = vld [vmem:[%s2 + $0x8] sm:$0xff]
      %v426 = vld [vmem:[%s2 + $0x10] sm:$0xff]
      %v433 = vunpack.c.l.b16 %v416
      %v434 = vunpack.c.l.b16 %v417
      %v435 = vunpack.c.l.b16 %v418
      %v436 = vunpack.c.l.b16 %v419
      %v437 = vunpack.c.l.b16 %v420
      %v438 = vunpack.c.l.b16 %v421
      %v439 = vpack.c.b16 %v434, %v433
      %v440 = vpack.c.b16 %v436, %v435
      %v441 = vpack.c.b16 %v438, %v437
      %vm445 = vcmask 392192
      %v447 = vsel %vm445, %v422, 0
      %v450 = vsel %vm445, %v423, 0
      %452 = vmatprep.subr.bf16.mxu0 0
      %453 = vmatpush1.bf16.msra.mxu0 %v439
      %454 = vmatprep.subr.bf16.mxu0 0
      %455 = vmatpush1.bf16.msra.mxu0 %v440
      %456 = vmatprep.subr.bf16.mxu0 0
      %457 = vmatpush1.bf16.msra.mxu0 %v441
      %458 = vmatprep.subr.bf16.mxu0 0
      %459 = vmatpush1.bf16.msra.mxu0 0
      %460 = vmatprep.subr.bf16.mxu0 0
      %461 = vmatpush1.bf16.msra.mxu0 0
      %462 = vmatprep.subr.bf16.mxu0 0
      %463 = vmatpush1.bf16.msra.mxu0 0
      %464 = vmatprep.subr.bf16.mxu0 0
      %465 = vmatpush1.bf16.msra.mxu0 0
      %466 = vmatprep.subr.bf16.mxu0 0
      %467 = vmatpush1.bf16.msra.mxu0 0
      %468 = vmatprep.subr.bf16.mxu0 0
      %469 = vmatpush1.bf16.msra.mxu0 0
      %470 = vmatprep.subr.bf16.mxu0 0
      %471 = vmatpush1.bf16.msra.mxu0 0
      %472 = vmatprep.subr.bf16.mxu0 0
      %473 = vmatpush1.bf16.msra.mxu0 0
      %474 = vmatprep.subr.bf16.mxu0 0
      %475 = vmatpush1.bf16.msra.mxu0 0
      %476 = vmatprep.subr.bf16.mxu0 0
      %477 = vmatpush1.bf16.msra.mxu0 0
      %478 = vmatprep.subr.bf16.mxu0 0
      %479 = vmatpush1.bf16.msra.mxu0 0
      %480 = vmatprep.subr.bf16.mxu0 0
      %481 = vmatpush1.bf16.msra.mxu0 0
      %482 = vmatprep.subr.bf16.mxu0 0
      %483 = vmatpush1.bf16.msra.mxu0 0
      %484 = vmatprep.mubr.bf16.mxu0 0
      %485 = vmatmul.mubr.bf16.gmra.mrb[0].mxu0 %v447
      %v486 = vpop.f32.mrb[0].mxu0
      %v487 = vadd.f32 %v424, %v486
      %v488 = vpop.f32.mrb[0].mxu0
      %v489 = vpop.f32.mrb[0].mxu0
      %v490 = vadd.f32 %v425, %v489
      %v491 = vpop.f32.mrb[0].mxu0
      %492 = vmatprep.mubr.bf16.mxu0 0
      %493 = vmatmul.mubr.bf16.gmra.mrb[0].mxu0 %v450
      %v494 = vpop.f32.mrb[0].mxu0
      %v495 = vadd.f32 %v426, %v494
      %v496 = vpop.f32.mrb[0].mxu0
      %v497 = vpop.f32.mrb[0].mxu0
      %v498 = vpop.f32.mrb[0].mxu0
      %499 = vdwg.mxu0
      %v500 = vlaneseq
      %v501 = vand.u32 %v500, 127
      %vm502 = vcmp.lt.s32.totalorder %v501, 17
      %v503 = vld [vmem:[%s7] sm:$0xff]
      %vm504 = vcmask 261120
      %v505 = vsel %vm504, %v487, 0.0
      %506 = vadd.xlane.f32.xlu0 %v505
      %v507 = vpop.xlane.xlu0 %506
      %v508 = vsel %vm504, %v490, 0.0
      %509 = vadd.xlane.f32.xlu0 %v508
      %v510 = vpop.xlane.xlu0 %509
      %v511 = vsel %vm504, %v495, 0.0
      %512 = vadd.xlane.f32.xlu0 %v511
      %v513 = vpop.xlane.xlu0 %512
      %v514 = vrcp.pop 32.0
      %v515 = vmul.f32 %v507, %v514
      %v516 = vmul.f32 %v510, %v514
      %v517 = vmul.f32 %v513, %v514
      %v518 = vsub.f32 %v487, %v515
      %v519 = vsub.f32 %v490, %v516
      %v520 = vsub.f32 %v495, %v517
      %v521 = vmul.f32 %v518, %v518
      %v522 = vmul.f32 %v519, %v519
      %v523 = vmul.f32 %v520, %v520
      %v524 = vsel %vm504, %v521, 0.0
      %525 = vadd.xlane.f32.xlu0 %v524
      %v526 = vpop.xlane.xlu0 %525
      %v527 = vsel %vm504, %v522, 0.0
      %528 = vadd.xlane.f32.xlu0 %v527
      %v529 = vpop.xlane.xlu0 %528
      %v530 = vsel %vm504, %v523, 0.0
      %531 = vadd.xlane.f32.xlu0 %v530
      %v532 = vpop.xlane.xlu0 %531
      %v533 = vmul.f32 %v526, %v514
      %v534 = vmul.f32 %v529, %v514
      %v535 = vmul.f32 %v532, %v514
      %v536 = vadd.f32 %v533, 1e-06
      %v537 = vadd.f32 %v534, 1e-06
      %v538 = vadd.f32 %v535, 1e-06
      %v539 = vrsqrt.pop %v536
      %v540 = vrsqrt.pop %v537
      %v541 = vrsqrt.pop %v538
      %v542 = vmul.f32 %v518, %v539
      %v543 = vmul.f32 %v519, %v540
      %v544 = vmul.f32 %v520, %v541
      %v545 = vlaneseq
      %v546 = vshrl.u32 %v545, 7
      %v547 = vsub.s32 0, %v546
      %v548 = vrot.slane %v503, %v547
      %v549 = vmul.f32 %v542, %v548
      %v550 = vmul.f32 %v543, %v548
      %v551 = vmul.f32 %v544, %v548
      %v552 = vlaneseq
      %v553 = vshrl.u32 %v552, 7
      %v554 = vsub.s32 1, %v553
      %v555 = vrot.slane %v503, %v554
      %v556 = vadd.f32 %v549, %v555
      %v557 = vadd.f32 %v550, %v555
      %v558 = vadd.f32 %v551, %v555
      %v559 = vld [vmem:[%s3] sm:$0xf]
      %v560 = vld [vmem:[%s3 + $0x4] sm:$0xf]
      %v561 = vld [vmem:[%s3 + $0x8] sm:$0xf]
      %v562 = vld [vmem:[%s3 + $0xc] sm:$0xf]
      %v563 = vpack.c.bf16 %v557, %v556
      %v564 = vpack.c.bf16 %v558, %v558
      %v565 = vlaneseq
      %v566 = vshrl.u32 %v565, 7
      %v567 = vsub.s32 2, %v566
      %v568 = vrot.slane %v503, %v567
      %v573 = vunpack.c.l.b16 %v559
      %v574 = vunpack.c.l.b16 %v560
      %v575 = vunpack.c.l.b16 %v561
      %v576 = vunpack.c.l.b16 %v562
      %v577 = vpack.c.b16 %v574, %v573
      %v578 = vpack.c.b16 %v576, %v575
      %v582 = vsel %vm504, %v563, 0
      %v585 = vsel %vm504, %v564, 0
      %587 = vmatprep.subr.bf16.mxu0 0
      %588 = vmatpush1.bf16.msra.mxu0 %v577
      %589 = vmatprep.subr.bf16.mxu0 0
      %590 = vmatpush1.bf16.msra.mxu0 %v578
      %591 = vmatprep.subr.bf16.mxu0 0
      %592 = vmatpush1.bf16.msra.mxu0 0
      %593 = vmatprep.subr.bf16.mxu0 0
      %594 = vmatpush1.bf16.msra.mxu0 0
      %595 = vmatprep.subr.bf16.mxu0 0
      %596 = vmatpush1.bf16.msra.mxu0 0
      %597 = vmatprep.subr.bf16.mxu0 0
      %598 = vmatpush1.bf16.msra.mxu0 0
      %599 = vmatprep.subr.bf16.mxu0 0
      %600 = vmatpush1.bf16.msra.mxu0 0
      %601 = vmatprep.subr.bf16.mxu0 0
      %602 = vmatpush1.bf16.msra.mxu0 0
      %603 = vmatprep.subr.bf16.mxu0 0
      %604 = vmatpush1.bf16.msra.mxu0 0
      %605 = vmatprep.subr.bf16.mxu0 0
      %606 = vmatpush1.bf16.msra.mxu0 0
      %607 = vmatprep.subr.bf16.mxu0 0
      %608 = vmatpush1.bf16.msra.mxu0 0
      %609 = vmatprep.subr.bf16.mxu0 0
      %610 = vmatpush1.bf16.msra.mxu0 0
      %611 = vmatprep.subr.bf16.mxu0 0
      %612 = vmatpush1.bf16.msra.mxu0 0
      %613 = vmatprep.subr.bf16.mxu0 0
      %614 = vmatpush1.bf16.msra.mxu0 0
      %615 = vmatprep.subr.bf16.mxu0 0
      %616 = vmatpush1.bf16.msra.mxu0 0
      %617 = vmatprep.subr.bf16.mxu0 0
      %618 = vmatpush1.bf16.msra.mxu0 0
      %619 = vmatprep.mubr.bf16.mxu0 0
      %620 = vmatmul.mubr.bf16.gmra.mrb[0].mxu0 %v582
      %v621 = vpop.f32.mrb[0].mxu0
      %v622 = vadd.f32 %v568, %v621
      %v623 = vpop.f32.mrb[0].mxu0
      %v624 = vpop.f32.mrb[0].mxu0
      %v625 = vadd.f32 %v568, %v624
      %v626 = vpop.f32.mrb[0].mxu0
      %627 = vmatprep.mubr.bf16.mxu0 0
      %628 = vmatmul.mubr.bf16.gmra.mrb[0].mxu0 %v585
      %v629 = vpop.f32.mrb[0].mxu0
      %v630 = vadd.f32 %v568, %v629
      %v631 = vpop.f32.mrb[0].mxu0
      %v632 = vpop.f32.mrb[0].mxu0
      %v633 = vpop.f32.mrb[0].mxu0
      %634 = vdwg.mxu0
      %v635 = vpack.c.bf16 %v625, %v622
      %v636 = vpack.c.bf16 %v630, %v630
      %639 = vrot.lane.b32.xlu0 %v635, 96
      %v640 = vpop.permute.xlu0 %639
      %641 = vrot.lane.b32.xlu0 %v636, 96
      %v642 = vpop.permute.xlu0 %641
      %v644 = vsel %vm504, %v635, 0
      %v647 = vsel %vm504, %v636, 0
      %v650 = vsel %vm504, %v640, 0
      %v653 = vsel %vm504, %v642, 0
      %655 = vmatprep.subr.bf16.mxu0 0
      %656 = vmatpush1.bf16.xpose.msra.mxu0 %v650
      %657 = vmatprep.subr.bf16.mxu0 0
      %658 = vmatpush1.bf16.xpose.msra.mxu0 %v653
      %659 = vmatprep.subr.bf16.mxu0 0
      %660 = vmatpush1.bf16.xpose.msra.mxu0 0
      %661 = vmatprep.subr.bf16.mxu0 0
      %662 = vmatpush1.bf16.xpose.msra.mxu0 0
      %663 = vmatprep.subr.bf16.mxu0 0
      %664 = vmatpush1.bf16.xpose.msra.mxu0 0
      %665 = vmatprep.subr.bf16.mxu0 0
      %666 = vmatpush1.bf16.xpose.msra.mxu0 0
      %667 = vmatprep.subr.bf16.mxu0 0
      %668 = vmatpush1.bf16.xpose.msra.mxu0 0
      %669 = vmatprep.subr.bf16.mxu0 0
      %670 = vmatpush1.bf16.xpose.msra.mxu0 0
      %671 = vmatprep.subr.bf16.mxu0 0
      %672 = vmatpush1.bf16.xpose.msra.mxu0 0
      %673 = vmatprep.subr.bf16.mxu0 0
      %674 = vmatpush1.bf16.xpose.msra.mxu0 0
      %675 = vmatprep.subr.bf16.mxu0 0
      %676 = vmatpush1.bf16.xpose.msra.mxu0 0
      %677 = vmatprep.subr.bf16.mxu0 0
      %678 = vmatpush1.bf16.xpose.msra.mxu0 0
      %679 = vmatprep.subr.bf16.mxu0 0
      %680 = vmatpush1.bf16.xpose.msra.mxu0 0
      %681 = vmatprep.subr.bf16.mxu0 0
      %682 = vmatpush1.bf16.xpose.msra.mxu0 0
      %683 = vmatprep.subr.bf16.mxu0 0
      %684 = vmatpush1.bf16.xpose.msra.mxu0 0
      %685 = vmatprep.subr.bf16.mxu0 0
      %686 = vmatpush1.bf16.xpose.msra.mxu0 0
      %687 = vmatprep.mubr.bf16.mxu0 0
      %688 = vmatmul.mubr.bf16.gmra.mrb[0].mxu0 %v644
      %v689 = vpop.f32.mrb[0].mxu0
      %v690 = vadd.f32 0.0, %v689
      %v691 = vpop.f32.mrb[0].mxu0
      %v692 = vpop.f32.mrb[0].mxu0
      %v693 = vadd.f32 0.0, %v692
      %v694 = vpop.f32.mrb[0].mxu0
      %695 = vmatprep.mubr.bf16.mxu0 0
      %696 = vmatmul.mubr.bf16.gmra.mrb[0].mxu0 %v647
      %v697 = vpop.f32.mrb[0].mxu0
      %v698 = vadd.f32 0.0, %v697
      %v699 = vpop.f32.mrb[0].mxu0
      %v700 = vpop.f32.mrb[0].mxu0
      %v701 = vpop.f32.mrb[0].mxu0
      %702 = vdwg.mxu0
      %v703 = vmul.f32 %v690, 0.17677669
      %v704 = vmul.f32 %v693, 0.17677669
      %v705 = vmul.f32 %v698, 0.17677669
      %v706 = vsel %vm502, %v703, -1e+30
      %v707 = vsel %vm502, %v704, -1e+30
      %v708 = vsel %vm502, %v705, -1e+30
      %vm709 = vcmask 195584
      %v710 = vsel %vm709, %v706, -inf
      %711 = vmax.xlane.f32.xlu0 %v710
      %v712 = vpop.xlane.xlu0 %711
      %v713 = vsel %vm709, %v707, -inf
      %714 = vmax.xlane.f32.xlu0 %v713
      %v715 = vpop.xlane.xlu0 %714
      %v716 = vsel %vm709, %v708, -inf
      %717 = vmax.xlane.f32.xlu0 %v716
      %v718 = vpop.xlane.xlu0 %717
      %v719 = vsub.f32 %v706, %v712
      %v720 = vsub.f32 %v707, %v715
      %v721 = vsub.f32 %v708, %v718
      %v722 = vmul.f32 %v719, 1.442695
      %v723 = vpow.pop %v722
      %v724 = vmul.f32 %v720, 1.442695
      %v725 = vpow.pop %v724
      %v726 = vmul.f32 %v721, 1.442695
      %v727 = vpow.pop %v726
      %v728 = vsel %vm709, %v723, 0.0
      %729 = vadd.xlane.f32.xlu0 %v728
      %v730 = vpop.xlane.xlu0 %729
      %v731 = vsel %vm709, %v725, 0.0
      %732 = vadd.xlane.f32.xlu0 %v731
      %v733 = vpop.xlane.xlu0 %732
      %v734 = vsel %vm709, %v727, 0.0
      %735 = vadd.xlane.f32.xlu0 %v734
      %v736 = vpop.xlane.xlu0 %735
      %v737 = vrcp.pop %v730
      %v738 = vrcp.pop %v733
      %v739 = vrcp.pop %v736
      %v740 = vmul.f32 %v723, %v737
      %v741 = vmul.f32 %v725, %v738
      %v742 = vmul.f32 %v727, %v739
      %v743 = vpack.c.bf16 %v741, %v740
      %v744 = vpack.c.bf16 %v742, %v742
      %745 = vrot.lane.b32.xlu0 %v635, 64
      %v746 = vpop.permute.xlu0 %745
      %747 = vrot.lane.b32.xlu0 %v636, 64
      %v748 = vpop.permute.xlu0 %747
      %v751 = vsel %vm709, %v743, 0
      %v754 = vsel %vm709, %v744, 0
      %vm756 = vcmask 1043456
      %v758 = vsel %vm756, %v748, 0
      %760 = vmatprep.subr.bf16.mxu0 0
      %761 = vmatpush1.bf16.msra.mxu0 %v746
      %762 = vmatprep.subr.bf16.mxu0 0
      %763 = vmatpush1.bf16.msra.mxu0 %v758
      %764 = vmatprep.subr.bf16.mxu0 0
      %765 = vmatpush1.bf16.msra.mxu0 0
      %766 = vmatprep.subr.bf16.mxu0 0
      %767 = vmatpush1.bf16.msra.mxu0 0
      %768 = vmatprep.subr.bf16.mxu0 0
      %769 = vmatpush1.bf16.msra.mxu0 0
      %770 = vmatprep.subr.bf16.mxu0 0
      %771 = vmatpush1.bf16.msra.mxu0 0
      %772 = vmatprep.subr.bf16.mxu0 0
      %773 = vmatpush1.bf16.msra.mxu0 0
      %774 = vmatprep.subr.bf16.mxu0 0
      %775 = vmatpush1.bf16.msra.mxu0 0
      %776 = vmatprep.subr.bf16.mxu0 0
      %777 = vmatpush1.bf16.msra.mxu0 0
      %778 = vmatprep.subr.bf16.mxu0 0
      %779 = vmatpush1.bf16.msra.mxu0 0
      %780 = vmatprep.subr.bf16.mxu0 0
      %781 = vmatpush1.bf16.msra.mxu0 0
      %782 = vmatprep.subr.bf16.mxu0 0
      %783 = vmatpush1.bf16.msra.mxu0 0
      %784 = vmatprep.subr.bf16.mxu0 0
      %785 = vmatpush1.bf16.msra.mxu0 0
      %786 = vmatprep.subr.bf16.mxu0 0
      %787 = vmatpush1.bf16.msra.mxu0 0
      %788 = vmatprep.subr.bf16.mxu0 0
      %789 = vmatpush1.bf16.msra.mxu0 0
      %790 = vmatprep.subr.bf16.mxu0 0
      %791 = vmatpush1.bf16.msra.mxu0 0
      %792 = vmatprep.mubr.bf16.mxu0 0
      %793 = vmatmul.mubr.bf16.gmra.mrb[0].mxu0 %v751
      %v794 = vpop.f32.mrb[0].mxu0
      %v795 = vadd.f32 0.0, %v794
      %v796 = vpop.f32.mrb[0].mxu0
      %v797 = vpop.f32.mrb[0].mxu0
      %v798 = vadd.f32 0.0, %v797
      %v799 = vpop.f32.mrb[0].mxu0
      %800 = vmatprep.mubr.bf16.mxu0 0
      %801 = vmatmul.mubr.bf16.gmra.mrb[0].mxu0 %v754
      %v802 = vpop.f32.mrb[0].mxu0
      %v803 = vadd.f32 0.0, %v802
      %v804 = vpop.f32.mrb[0].mxu0
      %v805 = vpop.f32.mrb[0].mxu0
      %v806 = vpop.f32.mrb[0].mxu0
      %807 = vdwg.mxu0
      %v808 = vld [vmem:[%s4] sm:$0xf]
      %v809 = vld [vmem:[%s4 + $0x4] sm:$0xf]
      %v810 = vld [vmem:[%s4 + $0x8] sm:$0xf]
      %v811 = vld [vmem:[%s4 + $0xc] sm:$0xf]
      %v812 = vpack.c.bf16 %v798, %v795
      %v813 = vpack.c.bf16 %v803, %v803
      %v818 = vunpack.c.l.b16 %v808
      %v819 = vunpack.c.l.b16 %v809
      %v820 = vunpack.c.l.b16 %v810
      %v821 = vunpack.c.l.b16 %v811
      %v822 = vpack.c.b16 %v819, %v818
      %v823 = vpack.c.b16 %v821, %v820
      %v827 = vsel %vm504, %v812, 0
      %v830 = vsel %vm504, %v813, 0
      %832 = vmatprep.subr.bf16.mxu0 0
      %833 = vmatpush1.bf16.msra.mxu0 %v822
      %834 = vmatprep.subr.bf16.mxu0 0
      %835 = vmatpush1.bf16.msra.mxu0 %v823
      %836 = vmatprep.subr.bf16.mxu0 0
      %837 = vmatpush1.bf16.msra.mxu0 0
      %838 = vmatprep.subr.bf16.mxu0 0
      %839 = vmatpush1.bf16.msra.mxu0 0
      %840 = vmatprep.subr.bf16.mxu0 0
      %841 = vmatpush1.bf16.msra.mxu0 0
      %842 = vmatprep.subr.bf16.mxu0 0
      %843 = vmatpush1.bf16.msra.mxu0 0
      %844 = vmatprep.subr.bf16.mxu0 0
      %845 = vmatpush1.bf16.msra.mxu0 0
      %846 = vmatprep.subr.bf16.mxu0 0
      %847 = vmatpush1.bf16.msra.mxu0 0
      %848 = vmatprep.subr.bf16.mxu0 0
      %849 = vmatpush1.bf16.msra.mxu0 0
      %850 = vmatprep.subr.bf16.mxu0 0
      %851 = vmatpush1.bf16.msra.mxu0 0
      %852 = vmatprep.subr.bf16.mxu0 0
      %853 = vmatpush1.bf16.msra.mxu0 0
      %854 = vmatprep.subr.bf16.mxu0 0
      %855 = vmatpush1.bf16.msra.mxu0 0
      %856 = vmatprep.subr.bf16.mxu0 0
      %857 = vmatpush1.bf16.msra.mxu0 0
      %858 = vmatprep.subr.bf16.mxu0 0
      %859 = vmatpush1.bf16.msra.mxu0 0
      %860 = vmatprep.subr.bf16.mxu0 0
      %861 = vmatpush1.bf16.msra.mxu0 0
      %862 = vmatprep.subr.bf16.mxu0 0
      %863 = vmatpush1.bf16.msra.mxu0 0
      %864 = vmatprep.mubr.bf16.mxu0 0
      %865 = vmatmul.mubr.bf16.gmra.mrb[0].mxu0 %v827
      %v866 = vpop.f32.mrb[0].mxu0
      %v867 = vadd.f32 0.0, %v866
      %v868 = vpop.f32.mrb[0].mxu0
      %v869 = vpop.f32.mrb[0].mxu0
      %v870 = vadd.f32 0.0, %v869
      %v871 = vpop.f32.mrb[0].mxu0
      %872 = vmatprep.mubr.bf16.mxu0 0
      %873 = vmatmul.mubr.bf16.gmra.mrb[0].mxu0 %v830
      %v874 = vpop.f32.mrb[0].mxu0
      %v875 = vadd.f32 0.0, %v874
      %v876 = vpop.f32.mrb[0].mxu0
      %v877 = vpop.f32.mrb[0].mxu0
      %v878 = vpop.f32.mrb[0].mxu0
      %879 = vdwg.mxu0
      %v880 = vadd.f32 %v487, %v867
      %v881 = vadd.f32 %v490, %v870
      %v882 = vadd.f32 %v495, %v875
      %v883 = vlaneseq
      %v884 = vshrl.u32 %v883, 7
      %v885 = vsub.s32 3, %v884
      %v886 = vrot.slane %v503, %v885
      %v887 = vadd.f32 %v880, %v886
      %v888 = vadd.f32 %v881, %v886
      %v889 = vadd.f32 %v882, %v886
      %v890 = vsel %vm504, %v887, 0.0
      %891 = vadd.xlane.f32.xlu0 %v890
      %v892 = vpop.xlane.xlu0 %891
      %v893 = vsel %vm504, %v888, 0.0
      %894 = vadd.xlane.f32.xlu0 %v893
      %v895 = vpop.xlane.xlu0 %894
      %v896 = vsel %vm504, %v889, 0.0
      %897 = vadd.xlane.f32.xlu0 %v896
      %v898 = vpop.xlane.xlu0 %897
      %v899 = vmul.f32 %v892, %v514
      %v900 = vmul.f32 %v895, %v514
      %v901 = vmul.f32 %v898, %v514
      %v902 = vsub.f32 %v887, %v899
      %v903 = vsub.f32 %v888, %v900
      %v904 = vsub.f32 %v889, %v901
      %v905 = vmul.f32 %v902, %v902
      %v906 = vmul.f32 %v903, %v903
      %v907 = vmul.f32 %v904, %v904
      %v908 = vsel %vm504, %v905, 0.0
      %909 = vadd.xlane.f32.xlu0 %v908
      %v910 = vpop.xlane.xlu0 %909
      %v911 = vsel %vm504, %v906, 0.0
      %912 = vadd.xlane.f32.xlu0 %v911
      %v913 = vpop.xlane.xlu0 %912
      %v914 = vsel %vm504, %v907, 0.0
      %915 = vadd.xlane.f32.xlu0 %v914
      %v916 = vpop.xlane.xlu0 %915
      %v917 = vmul.f32 %v910, %v514
      %v918 = vmul.f32 %v913, %v514
      %v919 = vmul.f32 %v916, %v514
      %v920 = vadd.f32 %v917, 1e-06
      %v921 = vadd.f32 %v918, 1e-06
      %v922 = vadd.f32 %v919, 1e-06
      %v923 = vrsqrt.pop %v920
      %v924 = vrsqrt.pop %v921
      %v925 = vrsqrt.pop %v922
      %v926 = vmul.f32 %v902, %v923
      %v927 = vmul.f32 %v903, %v924
      %v928 = vmul.f32 %v904, %v925
      %v929 = vlaneseq
      %v930 = vshrl.u32 %v929, 7
      %v931 = vsub.s32 4, %v930
      %v932 = vrot.slane %v503, %v931
      %v933 = vmul.f32 %v926, %v932
      %v934 = vmul.f32 %v927, %v932
      %v935 = vmul.f32 %v928, %v932
      %v936 = vlaneseq
      %v937 = vshrl.u32 %v936, 7
      %v938 = vsub.s32 5, %v937
      %v939 = vrot.slane %v503, %v938
      %v940 = vadd.f32 %v933, %v939
      %v941 = vadd.f32 %v934, %v939
      %v942 = vadd.f32 %v935, %v939
      %v943 = vld [vmem:[%s5] sm:$0xf]
      %v944 = vld [vmem:[%s5 + $0x4] sm:$0xf]
      %v945 = vld [vmem:[%s5 + $0x8] sm:$0xf]
      %v946 = vld [vmem:[%s5 + $0xc] sm:$0xf]
      %v947 = vpack.c.bf16 %v941, %v940
      %v948 = vpack.c.bf16 %v942, %v942
      %v949 = vlaneseq
      %v950 = vshrl.u32 %v949, 7
      %v951 = vsub.s32 6, %v950
      %v952 = vrot.slane %v503, %v951
      %v957 = vunpack.c.l.b16 %v943
      %v958 = vunpack.c.l.b16 %v944
      %v959 = vunpack.c.l.b16 %v945
      %v960 = vunpack.c.l.b16 %v946
      %v961 = vpack.c.b16 %v958, %v957
      %v962 = vpack.c.b16 %v960, %v959
      %v966 = vsel %vm504, %v947, 0
      %v969 = vsel %vm504, %v948, 0
      %971 = vmatprep.subr.bf16.mxu0 0
      %972 = vmatpush1.bf16.msra.mxu0 %v961
      %973 = vmatprep.subr.bf16.mxu0 0
      %974 = vmatpush1.bf16.msra.mxu0 %v962
      %975 = vmatprep.subr.bf16.mxu0 0
      %976 = vmatpush1.bf16.msra.mxu0 0
      %977 = vmatprep.subr.bf16.mxu0 0
      %978 = vmatpush1.bf16.msra.mxu0 0
      %979 = vmatprep.subr.bf16.mxu0 0
      %980 = vmatpush1.bf16.msra.mxu0 0
      %981 = vmatprep.subr.bf16.mxu0 0
      %982 = vmatpush1.bf16.msra.mxu0 0
      %983 = vmatprep.subr.bf16.mxu0 0
      %984 = vmatpush1.bf16.msra.mxu0 0
      %985 = vmatprep.subr.bf16.mxu0 0
      %986 = vmatpush1.bf16.msra.mxu0 0
      %987 = vmatprep.subr.bf16.mxu0 0
      %988 = vmatpush1.bf16.msra.mxu0 0
      %989 = vmatprep.subr.bf16.mxu0 0
      %990 = vmatpush1.bf16.msra.mxu0 0
      %991 = vmatprep.subr.bf16.mxu0 0
      %992 = vmatpush1.bf16.msra.mxu0 0
      %993 = vmatprep.subr.bf16.mxu0 0
      %994 = vmatpush1.bf16.msra.mxu0 0
      %995 = vmatprep.subr.bf16.mxu0 0
      %996 = vmatpush1.bf16.msra.mxu0 0
      %997 = vmatprep.subr.bf16.mxu0 0
      %998 = vmatpush1.bf16.msra.mxu0 0
      %999 = vmatprep.subr.bf16.mxu0 0
      %1000 = vmatpush1.bf16.msra.mxu0 0
      %1001 = vmatprep.subr.bf16.mxu0 0
      %1002 = vmatpush1.bf16.msra.mxu0 0
      %1003 = vmatprep.mubr.bf16.mxu0 0
      %1004 = vmatmul.mubr.bf16.gmra.mrb[0].mxu0 %v966
      %v1005 = vpop.f32.mrb[0].mxu0
      %v1006 = vadd.f32 %v952, %v1005
      %v1007 = vpop.f32.mrb[0].mxu0
      %v1008 = vpop.f32.mrb[0].mxu0
      %v1009 = vadd.f32 %v952, %v1008
      %v1010 = vpop.f32.mrb[0].mxu0
      %1011 = vmatprep.mubr.bf16.mxu0 0
      %1012 = vmatmul.mubr.bf16.gmra.mrb[0].mxu0 %v969
      %v1013 = vpop.f32.mrb[0].mxu0
      %v1014 = vadd.f32 %v952, %v1013
      %v1015 = vpop.f32.mrb[0].mxu0
      %v1016 = vpop.f32.mrb[0].mxu0
      %v1017 = vpop.f32.mrb[0].mxu0
      %1018 = vdwg.mxu0
      %v1019 = vmul.f32 %v1006, 0.5
      %v1020 = vmul.f32 %v1009, 0.5
      %v1021 = vmul.f32 %v1014, 0.5
      %v1022 = vmul.f32 %v1006, 0.044715
      %v1023 = vmul.f32 %v1009, 0.044715
      %v1024 = vmul.f32 %v1014, 0.044715
      %v1025 = vmul.f32 %v1022, %v1006
      %v1026 = vmul.f32 %v1023, %v1009
      %v1027 = vmul.f32 %v1024, %v1014
      %v1028 = vmul.f32 %v1025, %v1006
      %v1029 = vmul.f32 %v1026, %v1009
      %v1030 = vmul.f32 %v1027, %v1014
      %v1031 = vadd.f32 %v1006, %v1028
      %v1032 = vadd.f32 %v1009, %v1029
      %v1033 = vadd.f32 %v1014, %v1030
      %v1034 = vmul.f32 %v1031, 0.7978846
      %v1035 = vmul.f32 %v1032, 0.7978846
      %v1036 = vmul.f32 %v1033, 0.7978846
      %v1037 = vtanh.pop %v1034
      %v1038 = vtanh.pop %v1035
      %v1039 = vtanh.pop %v1036
      %v1040 = vadd.f32 %v1037, 1.0
      %v1041 = vadd.f32 %v1038, 1.0
      %v1042 = vadd.f32 %v1039, 1.0
      %v1043 = vmul.f32 %v1019, %v1040
      %v1044 = vmul.f32 %v1020, %v1041
      %v1045 = vmul.f32 %v1021, %v1042
      %v1046 = vld [vmem:[%s6] sm:$0xf]
      %v1047 = vld [vmem:[%s6 + $0x4] sm:$0xf]
      %v1048 = vld [vmem:[%s6 + $0x8] sm:$0xf]
      %v1049 = vld [vmem:[%s6 + $0xc] sm:$0xf]
      %v1050 = vld [vmem:[%s6 + $0x10] sm:$0xf]
      %v1051 = vld [vmem:[%s6 + $0x14] sm:$0xf]
      %v1052 = vld [vmem:[%s6 + $0x18] sm:$0xf]
      %v1053 = vld [vmem:[%s6 + $0x1c] sm:$0xf]
      %v1054 = vld [vmem:[%s6 + $0x20] sm:$0xf]
      %v1055 = vld [vmem:[%s6 + $0x24] sm:$0xf]
      %v1056 = vld [vmem:[%s6 + $0x28] sm:$0xf]
      %v1057 = vld [vmem:[%s6 + $0x2c] sm:$0xf]
      %v1058 = vld [vmem:[%s6 + $0x30] sm:$0xf]
      %v1059 = vld [vmem:[%s6 + $0x34] sm:$0xf]
      %v1060 = vld [vmem:[%s6 + $0x38] sm:$0xf]
      %v1061 = vld [vmem:[%s6 + $0x3c] sm:$0xf]
      %v1062 = vpack.c.bf16 %v1044, %v1043
      %v1063 = vpack.c.bf16 %v1045, %v1045
      %v1080 = vunpack.c.l.b16 %v1046
      %v1081 = vunpack.c.l.b16 %v1047
      %v1082 = vunpack.c.l.b16 %v1048
      %v1083 = vunpack.c.l.b16 %v1049
      %v1084 = vunpack.c.l.b16 %v1050
      %v1085 = vunpack.c.l.b16 %v1051
      %v1086 = vunpack.c.l.b16 %v1052
      %v1087 = vunpack.c.l.b16 %v1053
      %v1088 = vunpack.c.l.b16 %v1054
      %v1089 = vunpack.c.l.b16 %v1055
      %v1090 = vunpack.c.l.b16 %v1056
      %v1091 = vunpack.c.l.b16 %v1057
      %v1092 = vunpack.c.l.b16 %v1058
      %v1093 = vunpack.c.l.b16 %v1059
      %v1094 = vunpack.c.l.b16 %v1060
      %v1095 = vunpack.c.l.b16 %v1061
      %v1096 = vpack.c.b16 %v1081, %v1080
      %v1097 = vpack.c.b16 %v1083, %v1082
      %v1098 = vpack.c.b16 %v1085, %v1084
      %v1099 = vpack.c.b16 %v1087, %v1086
      %v1100 = vpack.c.b16 %v1089, %v1088
      %v1101 = vpack.c.b16 %v1091, %v1090
      %v1102 = vpack.c.b16 %v1093, %v1092
      %v1103 = vpack.c.b16 %v1095, %v1094
      %1112 = vmatprep.subr.bf16.mxu0 0
      %1113 = vmatpush1.bf16.msra.mxu0 %v1096
      %1114 = vmatprep.subr.bf16.mxu0 0
      %1115 = vmatpush1.bf16.msra.mxu0 %v1097
      %1116 = vmatprep.subr.bf16.mxu0 0
      %1117 = vmatpush1.bf16.msra.mxu0 %v1098
      %1118 = vmatprep.subr.bf16.mxu0 0
      %1119 = vmatpush1.bf16.msra.mxu0 %v1099
      %1120 = vmatprep.subr.bf16.mxu0 0
      %1121 = vmatpush1.bf16.msra.mxu0 %v1100
      %1122 = vmatprep.subr.bf16.mxu0 0
      %1123 = vmatpush1.bf16.msra.mxu0 %v1101
      %1124 = vmatprep.subr.bf16.mxu0 0
      %1125 = vmatpush1.bf16.msra.mxu0 %v1102
      %1126 = vmatprep.subr.bf16.mxu0 0
      %1127 = vmatpush1.bf16.msra.mxu0 %v1103
      %1128 = vmatprep.subr.bf16.mxu0 0
      %1129 = vmatpush1.bf16.msra.mxu0 0
      %1130 = vmatprep.subr.bf16.mxu0 0
      %1131 = vmatpush1.bf16.msra.mxu0 0
      %1132 = vmatprep.subr.bf16.mxu0 0
      %1133 = vmatpush1.bf16.msra.mxu0 0
      %1134 = vmatprep.subr.bf16.mxu0 0
      %1135 = vmatpush1.bf16.msra.mxu0 0
      %1136 = vmatprep.subr.bf16.mxu0 0
      %1137 = vmatpush1.bf16.msra.mxu0 0
      %1138 = vmatprep.subr.bf16.mxu0 0
      %1139 = vmatpush1.bf16.msra.mxu0 0
      %1140 = vmatprep.subr.bf16.mxu0 0
      %1141 = vmatpush1.bf16.msra.mxu0 0
      %1142 = vmatprep.subr.bf16.mxu0 0
      %1143 = vmatpush1.bf16.msra.mxu0 0
      %1144 = vmatprep.mubr.bf16.mxu0 0
      %1145 = vmatmul.mubr.bf16.gmra.mrb[0].mxu0 %v1062
      %v1146 = vpop.f32.mrb[0].mxu0
      %v1147 = vadd.f32 0.0, %v1146
      %v1148 = vpop.f32.mrb[0].mxu0
      %v1149 = vpop.f32.mrb[0].mxu0
      %v1150 = vadd.f32 0.0, %v1149
      %v1151 = vpop.f32.mrb[0].mxu0
      %1152 = vmatprep.mubr.bf16.mxu0 0
      %1153 = vmatmul.mubr.bf16.gmra.mrb[0].mxu0 %v1063
      %v1154 = vpop.f32.mrb[0].mxu0
      %v1155 = vadd.f32 0.0, %v1154
      %v1156 = vpop.f32.mrb[0].mxu0
      %v1157 = vpop.f32.mrb[0].mxu0
      %v1158 = vpop.f32.mrb[0].mxu0
      %1159 = vdwg.mxu0
      %v1160 = vadd.f32 %v887, %v1147
      %v1161 = vadd.f32 %v888, %v1150
      %v1162 = vadd.f32 %v889, %v1155
      %v1163 = vlaneseq
      %v1164 = vshrl.u32 %v1163, 7
      %v1165 = vsub.s32 7, %v1164
      %v1166 = vrot.slane %v503, %v1165
      %v1167 = vadd.f32 %v1160, %v1166
      %v1168 = vadd.f32 %v1161, %v1166
      %v1169 = vadd.f32 %v1162, %v1166
      %s1170 = scalar_lea.vmem %s7, 8
      %v1171 = vld [vmem:[%s1170] sm:$0xff]
      %v1172 = vsel %vm504, %v1167, 0.0
      %1173 = vadd.xlane.f32.xlu0 %v1172
      %v1174 = vpop.xlane.xlu0 %1173
      %v1175 = vsel %vm504, %v1168, 0.0
      %1176 = vadd.xlane.f32.xlu0 %v1175
      %v1177 = vpop.xlane.xlu0 %1176
      %v1178 = vsel %vm504, %v1169, 0.0
      %1179 = vadd.xlane.f32.xlu0 %v1178
      %v1180 = vpop.xlane.xlu0 %1179
      %v1181 = vmul.f32 %v1174, %v514
      %v1182 = vmul.f32 %v1177, %v514
      %v1183 = vmul.f32 %v1180, %v514
      %v1184 = vsub.f32 %v1167, %v1181
      %v1185 = vsub.f32 %v1168, %v1182
      %v1186 = vsub.f32 %v1169, %v1183
      %v1187 = vmul.f32 %v1184, %v1184
      %v1188 = vmul.f32 %v1185, %v1185
      %v1189 = vmul.f32 %v1186, %v1186
      %v1190 = vsel %vm504, %v1187, 0.0
      %1191 = vadd.xlane.f32.xlu0 %v1190
      %v1192 = vpop.xlane.xlu0 %1191
      %v1193 = vsel %vm504, %v1188, 0.0
      %1194 = vadd.xlane.f32.xlu0 %v1193
      %v1195 = vpop.xlane.xlu0 %1194
      %v1196 = vsel %vm504, %v1189, 0.0
      %1197 = vadd.xlane.f32.xlu0 %v1196
      %v1198 = vpop.xlane.xlu0 %1197
      %v1199 = vmul.f32 %v1192, %v514
      %v1200 = vmul.f32 %v1195, %v514
      %v1201 = vmul.f32 %v1198, %v514
      %v1202 = vadd.f32 %v1199, 1e-06
      %v1203 = vadd.f32 %v1200, 1e-06
      %v1204 = vadd.f32 %v1201, 1e-06
      %v1205 = vrsqrt.pop %v1202
      %v1206 = vrsqrt.pop %v1203
      %v1207 = vrsqrt.pop %v1204
      %v1208 = vmul.f32 %v1184, %v1205
      %v1209 = vmul.f32 %v1185, %v1206
      %v1210 = vmul.f32 %v1186, %v1207
      %v1211 = vlaneseq
      %v1212 = vshrl.u32 %v1211, 7
      %v1213 = vsub.s32 0, %v1212
      %v1214 = vrot.slane %v1171, %v1213
      %v1215 = vmul.f32 %v1208, %v1214
      %v1216 = vmul.f32 %v1209, %v1214
      %v1217 = vmul.f32 %v1210, %v1214
      %v1218 = vlaneseq
      %v1219 = vshrl.u32 %v1218, 7
      %v1220 = vsub.s32 1, %v1219
      %v1221 = vrot.slane %v1171, %v1220
      %v1222 = vadd.f32 %v1215, %v1221
      %v1223 = vadd.f32 %v1216, %v1221
      %v1224 = vadd.f32 %v1217, %v1221
      %s1225 = scalar_lea.vmem %s3, 16
      %v1226 = vld [vmem:[%s1225] sm:$0xf]
      %v1227 = vld [vmem:[%s1225 + $0x4] sm:$0xf]
      %v1228 = vld [vmem:[%s1225 + $0x8] sm:$0xf]
      %v1229 = vld [vmem:[%s1225 + $0xc] sm:$0xf]
      %v1230 = vpack.c.bf16 %v1223, %v1222
      %v1231 = vpack.c.bf16 %v1224, %v1224
      %v1232 = vlaneseq
      %v1233 = vshrl.u32 %v1232, 7
      %v1234 = vsub.s32 2, %v1233
      %v1235 = vrot.slane %v1171, %v1234
      %v1240 = vunpack.c.l.b16 %v1226
      %v1241 = vunpack.c.l.b16 %v1227
      %v1242 = vunpack.c.l.b16 %v1228
      %v1243 = vunpack.c.l.b16 %v1229
      %v1244 = vpack.c.b16 %v1241, %v1240
      %v1245 = vpack.c.b16 %v1243, %v1242
      %v1249 = vsel %vm504, %v1230, 0
      %v1252 = vsel %vm504, %v1231, 0
      %1254 = vmatprep.subr.bf16.mxu0 0
      %1255 = vmatpush1.bf16.msra.mxu0 %v1244
      %1256 = vmatprep.subr.bf16.mxu0 0
      %1257 = vmatpush1.bf16.msra.mxu0 %v1245
      %1258 = vmatprep.subr.bf16.mxu0 0
      %1259 = vmatpush1.bf16.msra.mxu0 0
      %1260 = vmatprep.subr.bf16.mxu0 0
      %1261 = vmatpush1.bf16.msra.mxu0 0
      %1262 = vmatprep.subr.bf16.mxu0 0
      %1263 = vmatpush1.bf16.msra.mxu0 0
      %1264 = vmatprep.subr.bf16.mxu0 0
      %1265 = vmatpush1.bf16.msra.mxu0 0
      %1266 = vmatprep.subr.bf16.mxu0 0
      %1267 = vmatpush1.bf16.msra.mxu0 0
      %1268 = vmatprep.subr.bf16.mxu0 0
      %1269 = vmatpush1.bf16.msra.mxu0 0
      %1270 = vmatprep.subr.bf16.mxu0 0
      %1271 = vmatpush1.bf16.msra.mxu0 0
      %1272 = vmatprep.subr.bf16.mxu0 0
      %1273 = vmatpush1.bf16.msra.mxu0 0
      %1274 = vmatprep.subr.bf16.mxu0 0
      %1275 = vmatpush1.bf16.msra.mxu0 0
      %1276 = vmatprep.subr.bf16.mxu0 0
      %1277 = vmatpush1.bf16.msra.mxu0 0
      %1278 = vmatprep.subr.bf16.mxu0 0
      %1279 = vmatpush1.bf16.msra.mxu0 0
      %1280 = vmatprep.subr.bf16.mxu0 0
      %1281 = vmatpush1.bf16.msra.mxu0 0
      %1282 = vmatprep.subr.bf16.mxu0 0
      %1283 = vmatpush1.bf16.msra.mxu0 0
      %1284 = vmatprep.subr.bf16.mxu0 0
      %1285 = vmatpush1.bf16.msra.mxu0 0
      %1286 = vmatprep.mubr.bf16.mxu0 0
      %1287 = vmatmul.mubr.bf16.gmra.mrb[0].mxu0 %v1249
      %v1288 = vpop.f32.mrb[0].mxu0
      %v1289 = vadd.f32 %v1235, %v1288
      %v1290 = vpop.f32.mrb[0].mxu0
      %v1291 = vpop.f32.mrb[0].mxu0
      %v1292 = vadd.f32 %v1235, %v1291
      %v1293 = vpop.f32.mrb[0].mxu0
      %1294 = vmatprep.mubr.bf16.mxu0 0
      %1295 = vmatmul.mubr.bf16.gmra.mrb[0].mxu0 %v1252
      %v1296 = vpop.f32.mrb[0].mxu0
      %v1297 = vadd.f32 %v1235, %v1296
      %v1298 = vpop.f32.mrb[0].mxu0
      %v1299 = vpop.f32.mrb[0].mxu0
      %v1300 = vpop.f32.mrb[0].mxu0
      %1301 = vdwg.mxu0
      %v1302 = vpack.c.bf16 %v1292, %v1289
      %v1303 = vpack.c.bf16 %v1297, %v1297
      %1306 = vrot.lane.b32.xlu0 %v1302, 96
      %v1307 = vpop.permute.xlu0 %1306
      %1308 = vrot.lane.b32.xlu0 %v1303, 96
      %v1309 = vpop.permute.xlu0 %1308
      %v1311 = vsel %vm504, %v1302, 0
      %v1314 = vsel %vm504, %v1303, 0
      %v1317 = vsel %vm504, %v1307, 0
      %v1320 = vsel %vm504, %v1309, 0
      %1322 = vmatprep.subr.bf16.mxu0 0
      %1323 = vmatpush1.bf16.xpose.msra.mxu0 %v1317
      %1324 = vmatprep.subr.bf16.mxu0 0
      %1325 = vmatpush1.bf16.xpose.msra.mxu0 %v1320
      %1326 = vmatprep.subr.bf16.mxu0 0
      %1327 = vmatpush1.bf16.xpose.msra.mxu0 0
      %1328 = vmatprep.subr.bf16.mxu0 0
      %1329 = vmatpush1.bf16.xpose.msra.mxu0 0
      %1330 = vmatprep.subr.bf16.mxu0 0
      %1331 = vmatpush1.bf16.xpose.msra.mxu0 0
      %1332 = vmatprep.subr.bf16.mxu0 0
      %1333 = vmatpush1.bf16.xpose.msra.mxu0 0
      %1334 = vmatprep.subr.bf16.mxu0 0
      %1335 = vmatpush1.bf16.xpose.msra.mxu0 0
      %1336 = vmatprep.subr.bf16.mxu0 0
      %1337 = vmatpush1.bf16.xpose.msra.mxu0 0
      %1338 = vmatprep.subr.bf16.mxu0 0
      %1339 = vmatpush1.bf16.xpose.msra.mxu0 0
      %1340 = vmatprep.subr.bf16.mxu0 0
      %1341 = vmatpush1.bf16.xpose.msra.mxu0 0
      %1342 = vmatprep.subr.bf16.mxu0 0
      %1343 = vmatpush1.bf16.xpose.msra.mxu0 0
      %1344 = vmatprep.subr.bf16.mxu0 0
      %1345 = vmatpush1.bf16.xpose.msra.mxu0 0
      %1346 = vmatprep.subr.bf16.mxu0 0
      %1347 = vmatpush1.bf16.xpose.msra.mxu0 0
      %1348 = vmatprep.subr.bf16.mxu0 0
      %1349 = vmatpush1.bf16.xpose.msra.mxu0 0
      %1350 = vmatprep.subr.bf16.mxu0 0
      %1351 = vmatpush1.bf16.xpose.msra.mxu0 0
      %1352 = vmatprep.subr.bf16.mxu0 0
      %1353 = vmatpush1.bf16.xpose.msra.mxu0 0
      %1354 = vmatprep.mubr.bf16.mxu0 0
      %1355 = vmatmul.mubr.bf16.gmra.mrb[0].mxu0 %v1311
      %v1356 = vpop.f32.mrb[0].mxu0
      %v1357 = vadd.f32 0.0, %v1356
      %v1358 = vpop.f32.mrb[0].mxu0
      %v1359 = vpop.f32.mrb[0].mxu0
      %v1360 = vadd.f32 0.0, %v1359
      %v1361 = vpop.f32.mrb[0].mxu0
      %1362 = vmatprep.mubr.bf16.mxu0 0
      %1363 = vmatmul.mubr.bf16.gmra.mrb[0].mxu0 %v1314
      %v1364 = vpop.f32.mrb[0].mxu0
      %v1365 = vadd.f32 0.0, %v1364
      %v1366 = vpop.f32.mrb[0].mxu0
      %v1367 = vpop.f32.mrb[0].mxu0
      %v1368 = vpop.f32.mrb[0].mxu0
      %1369 = vdwg.mxu0
      %v1370 = vmul.f32 %v1357, 0.17677669
      %v1371 = vmul.f32 %v1360, 0.17677669
      %v1372 = vmul.f32 %v1365, 0.17677669
      %v1373 = vsel %vm502, %v1370, -1e+30
      %v1374 = vsel %vm502, %v1371, -1e+30
      %v1375 = vsel %vm502, %v1372, -1e+30
      %v1376 = vsel %vm709, %v1373, -inf
      %1377 = vmax.xlane.f32.xlu0 %v1376
      %v1378 = vpop.xlane.xlu0 %1377
      %v1379 = vsel %vm709, %v1374, -inf
      %1380 = vmax.xlane.f32.xlu0 %v1379
      %v1381 = vpop.xlane.xlu0 %1380
      %v1382 = vsel %vm709, %v1375, -inf
      %1383 = vmax.xlane.f32.xlu0 %v1382
      %v1384 = vpop.xlane.xlu0 %1383
      %v1385 = vsub.f32 %v1373, %v1378
      %v1386 = vsub.f32 %v1374, %v1381
      %v1387 = vsub.f32 %v1375, %v1384
      %v1388 = vmul.f32 %v1385, 1.442695
      %v1389 = vpow.pop %v1388
      %v1390 = vmul.f32 %v1386, 1.442695
      %v1391 = vpow.pop %v1390
      %v1392 = vmul.f32 %v1387, 1.442695
      %v1393 = vpow.pop %v1392
      %v1394 = vsel %vm709, %v1389, 0.0
      %1395 = vadd.xlane.f32.xlu0 %v1394
      %v1396 = vpop.xlane.xlu0 %1395
      %v1397 = vsel %vm709, %v1391, 0.0
      %1398 = vadd.xlane.f32.xlu0 %v1397
      %v1399 = vpop.xlane.xlu0 %1398
      %v1400 = vsel %vm709, %v1393, 0.0
      %1401 = vadd.xlane.f32.xlu0 %v1400
      %v1402 = vpop.xlane.xlu0 %1401
      %v1403 = vrcp.pop %v1396
      %v1404 = vrcp.pop %v1399
      %v1405 = vrcp.pop %v1402
      %v1406 = vmul.f32 %v1389, %v1403
      %v1407 = vmul.f32 %v1391, %v1404
      %v1408 = vmul.f32 %v1393, %v1405
      %v1409 = vpack.c.bf16 %v1407, %v1406
      %v1410 = vpack.c.bf16 %v1408, %v1408
      %1411 = vrot.lane.b32.xlu0 %v1302, 64
      %v1412 = vpop.permute.xlu0 %1411
      %1413 = vrot.lane.b32.xlu0 %v1303, 64
      %v1414 = vpop.permute.xlu0 %1413
      %v1417 = vsel %vm709, %v1409, 0
      %v1420 = vsel %vm709, %v1410, 0
      %v1423 = vsel %vm756, %v1414, 0
      %1425 = vmatprep.subr.bf16.mxu0 0
      %1426 = vmatpush1.bf16.msra.mxu0 %v1412
      %1427 = vmatprep.subr.bf16.mxu0 0
      %1428 = vmatpush1.bf16.msra.mxu0 %v1423
      %1429 = vmatprep.subr.bf16.mxu0 0
      %1430 = vmatpush1.bf16.msra.mxu0 0
      %1431 = vmatprep.subr.bf16.mxu0 0
      %1432 = vmatpush1.bf16.msra.mxu0 0
      %1433 = vmatprep.subr.bf16.mxu0 0
      %1434 = vmatpush1.bf16.msra.mxu0 0
      %1435 = vmatprep.subr.bf16.mxu0 0
      %1436 = vmatpush1.bf16.msra.mxu0 0
      %1437 = vmatprep.subr.bf16.mxu0 0
      %1438 = vmatpush1.bf16.msra.mxu0 0
      %1439 = vmatprep.subr.bf16.mxu0 0
      %1440 = vmatpush1.bf16.msra.mxu0 0
      %1441 = vmatprep.subr.bf16.mxu0 0
      %1442 = vmatpush1.bf16.msra.mxu0 0
      %1443 = vmatprep.subr.bf16.mxu0 0
      %1444 = vmatpush1.bf16.msra.mxu0 0
      %1445 = vmatprep.subr.bf16.mxu0 0
      %1446 = vmatpush1.bf16.msra.mxu0 0
      %1447 = vmatprep.subr.bf16.mxu0 0
      %1448 = vmatpush1.bf16.msra.mxu0 0
      %1449 = vmatprep.subr.bf16.mxu0 0
      %1450 = vmatpush1.bf16.msra.mxu0 0
      %1451 = vmatprep.subr.bf16.mxu0 0
      %1452 = vmatpush1.bf16.msra.mxu0 0
      %1453 = vmatprep.subr.bf16.mxu0 0
      %1454 = vmatpush1.bf16.msra.mxu0 0
      %1455 = vmatprep.subr.bf16.mxu0 0
      %1456 = vmatpush1.bf16.msra.mxu0 0
      %1457 = vmatprep.mubr.bf16.mxu0 0
      %1458 = vmatmul.mubr.bf16.gmra.mrb[0].mxu0 %v1417
      %v1459 = vpop.f32.mrb[0].mxu0
      %v1460 = vadd.f32 0.0, %v1459
      %v1461 = vpop.f32.mrb[0].mxu0
      %v1462 = vpop.f32.mrb[0].mxu0
      %v1463 = vadd.f32 0.0, %v1462
      %v1464 = vpop.f32.mrb[0].mxu0
      %1465 = vmatprep.mubr.bf16.mxu0 0
      %1466 = vmatmul.mubr.bf16.gmra.mrb[0].mxu0 %v1420
      %v1467 = vpop.f32.mrb[0].mxu0
      %v1468 = vadd.f32 0.0, %v1467
      %v1469 = vpop.f32.mrb[0].mxu0
      %v1470 = vpop.f32.mrb[0].mxu0
      %v1471 = vpop.f32.mrb[0].mxu0
      %1472 = vdwg.mxu0
      %s1473 = scalar_lea.vmem %s4, 16
      %v1474 = vld [vmem:[%s1473] sm:$0xf]
      %v1475 = vld [vmem:[%s1473 + $0x4] sm:$0xf]
      %v1476 = vld [vmem:[%s1473 + $0x8] sm:$0xf]
      %v1477 = vld [vmem:[%s1473 + $0xc] sm:$0xf]
      %v1478 = vpack.c.bf16 %v1463, %v1460
      %v1479 = vpack.c.bf16 %v1468, %v1468
      %v1484 = vunpack.c.l.b16 %v1474
      %v1485 = vunpack.c.l.b16 %v1475
      %v1486 = vunpack.c.l.b16 %v1476
      %v1487 = vunpack.c.l.b16 %v1477
      %v1488 = vpack.c.b16 %v1485, %v1484
      %v1489 = vpack.c.b16 %v1487, %v1486
      %v1493 = vsel %vm504, %v1478, 0
      %v1496 = vsel %vm504, %v1479, 0
      %1498 = vmatprep.subr.bf16.mxu0 0
      %1499 = vmatpush1.bf16.msra.mxu0 %v1488
      %1500 = vmatprep.subr.bf16.mxu0 0
      %1501 = vmatpush1.bf16.msra.mxu0 %v1489
      %1502 = vmatprep.subr.bf16.mxu0 0
      %1503 = vmatpush1.bf16.msra.mxu0 0
      %1504 = vmatprep.subr.bf16.mxu0 0
      %1505 = vmatpush1.bf16.msra.mxu0 0
      %1506 = vmatprep.subr.bf16.mxu0 0
      %1507 = vmatpush1.bf16.msra.mxu0 0
      %1508 = vmatprep.subr.bf16.mxu0 0
      %1509 = vmatpush1.bf16.msra.mxu0 0
      %1510 = vmatprep.subr.bf16.mxu0 0
      %1511 = vmatpush1.bf16.msra.mxu0 0
      %1512 = vmatprep.subr.bf16.mxu0 0
      %1513 = vmatpush1.bf16.msra.mxu0 0
      %1514 = vmatprep.subr.bf16.mxu0 0
      %1515 = vmatpush1.bf16.msra.mxu0 0
      %1516 = vmatprep.subr.bf16.mxu0 0
      %1517 = vmatpush1.bf16.msra.mxu0 0
      %1518 = vmatprep.subr.bf16.mxu0 0
      %1519 = vmatpush1.bf16.msra.mxu0 0
      %1520 = vmatprep.subr.bf16.mxu0 0
      %1521 = vmatpush1.bf16.msra.mxu0 0
      %1522 = vmatprep.subr.bf16.mxu0 0
      %1523 = vmatpush1.bf16.msra.mxu0 0
      %1524 = vmatprep.subr.bf16.mxu0 0
      %1525 = vmatpush1.bf16.msra.mxu0 0
      %1526 = vmatprep.subr.bf16.mxu0 0
      %1527 = vmatpush1.bf16.msra.mxu0 0
      %1528 = vmatprep.subr.bf16.mxu0 0
      %1529 = vmatpush1.bf16.msra.mxu0 0
      %1530 = vmatprep.mubr.bf16.mxu0 0
      %1531 = vmatmul.mubr.bf16.gmra.mrb[0].mxu0 %v1493
      %v1532 = vpop.f32.mrb[0].mxu0
      %v1533 = vadd.f32 0.0, %v1532
      %v1534 = vpop.f32.mrb[0].mxu0
      %v1535 = vpop.f32.mrb[0].mxu0
      %v1536 = vadd.f32 0.0, %v1535
      %v1537 = vpop.f32.mrb[0].mxu0
      %1538 = vmatprep.mubr.bf16.mxu0 0
      %1539 = vmatmul.mubr.bf16.gmra.mrb[0].mxu0 %v1496
      %v1540 = vpop.f32.mrb[0].mxu0
      %v1541 = vadd.f32 0.0, %v1540
      %v1542 = vpop.f32.mrb[0].mxu0
      %v1543 = vpop.f32.mrb[0].mxu0
      %v1544 = vpop.f32.mrb[0].mxu0
      %1545 = vdwg.mxu0
      %v1546 = vadd.f32 %v1167, %v1533
      %v1547 = vadd.f32 %v1168, %v1536
      %v1548 = vadd.f32 %v1169, %v1541
      %v1549 = vlaneseq
      %v1550 = vshrl.u32 %v1549, 7
      %v1551 = vsub.s32 3, %v1550
      %v1552 = vrot.slane %v1171, %v1551
      %v1553 = vadd.f32 %v1546, %v1552
      %v1554 = vadd.f32 %v1547, %v1552
      %v1555 = vadd.f32 %v1548, %v1552
      %v1556 = vsel %vm504, %v1553, 0.0
      %1557 = vadd.xlane.f32.xlu0 %v1556
      %v1558 = vpop.xlane.xlu0 %1557
      %v1559 = vsel %vm504, %v1554, 0.0
      %1560 = vadd.xlane.f32.xlu0 %v1559
      %v1561 = vpop.xlane.xlu0 %1560
      %v1562 = vsel %vm504, %v1555, 0.0
      %1563 = vadd.xlane.f32.xlu0 %v1562
      %v1564 = vpop.xlane.xlu0 %1563
      %v1565 = vmul.f32 %v1558, %v514
      %v1566 = vmul.f32 %v1561, %v514
      %v1567 = vmul.f32 %v1564, %v514
      %v1568 = vsub.f32 %v1553, %v1565
      %v1569 = vsub.f32 %v1554, %v1566
      %v1570 = vsub.f32 %v1555, %v1567
      %v1571 = vmul.f32 %v1568, %v1568
      %v1572 = vmul.f32 %v1569, %v1569
      %v1573 = vmul.f32 %v1570, %v1570
      %v1574 = vsel %vm504, %v1571, 0.0
      %1575 = vadd.xlane.f32.xlu0 %v1574
      %v1576 = vpop.xlane.xlu0 %1575
      %v1577 = vsel %vm504, %v1572, 0.0
      %1578 = vadd.xlane.f32.xlu0 %v1577
      %v1579 = vpop.xlane.xlu0 %1578
      %v1580 = vsel %vm504, %v1573, 0.0
      %1581 = vadd.xlane.f32.xlu0 %v1580
      %v1582 = vpop.xlane.xlu0 %1581
      %v1583 = vmul.f32 %v1576, %v514
      %v1584 = vmul.f32 %v1579, %v514
      %v1585 = vmul.f32 %v1582, %v514
      %v1586 = vadd.f32 %v1583, 1e-06
      %v1587 = vadd.f32 %v1584, 1e-06
      %v1588 = vadd.f32 %v1585, 1e-06
      %v1589 = vrsqrt.pop %v1586
      %v1590 = vrsqrt.pop %v1587
      %v1591 = vrsqrt.pop %v1588
      %v1592 = vmul.f32 %v1568, %v1589
      %v1593 = vmul.f32 %v1569, %v1590
      %v1594 = vmul.f32 %v1570, %v1591
      %v1595 = vlaneseq
      %v1596 = vshrl.u32 %v1595, 7
      %v1597 = vsub.s32 4, %v1596
      %v1598 = vrot.slane %v1171, %v1597
      %v1599 = vmul.f32 %v1592, %v1598
      %v1600 = vmul.f32 %v1593, %v1598
      %v1601 = vmul.f32 %v1594, %v1598
      %v1602 = vlaneseq
      %v1603 = vshrl.u32 %v1602, 7
      %v1604 = vsub.s32 5, %v1603
      %v1605 = vrot.slane %v1171, %v1604
      %v1606 = vadd.f32 %v1599, %v1605
      %v1607 = vadd.f32 %v1600, %v1605
      %v1608 = vadd.f32 %v1601, %v1605
      %s1609 = scalar_lea.vmem %s5, 16
      %v1610 = vld [vmem:[%s1609] sm:$0xf]
      %v1611 = vld [vmem:[%s1609 + $0x4] sm:$0xf]
      %v1612 = vld [vmem:[%s1609 + $0x8] sm:$0xf]
      %v1613 = vld [vmem:[%s1609 + $0xc] sm:$0xf]
      %v1614 = vpack.c.bf16 %v1607, %v1606
      %v1615 = vpack.c.bf16 %v1608, %v1608
      %v1616 = vlaneseq
      %v1617 = vshrl.u32 %v1616, 7
      %v1618 = vsub.s32 6, %v1617
      %v1619 = vrot.slane %v1171, %v1618
      %v1624 = vunpack.c.l.b16 %v1610
      %v1625 = vunpack.c.l.b16 %v1611
      %v1626 = vunpack.c.l.b16 %v1612
      %v1627 = vunpack.c.l.b16 %v1613
      %v1628 = vpack.c.b16 %v1625, %v1624
      %v1629 = vpack.c.b16 %v1627, %v1626
      %v1633 = vsel %vm504, %v1614, 0
      %v1636 = vsel %vm504, %v1615, 0
      %1638 = vmatprep.subr.bf16.mxu0 0
      %1639 = vmatpush1.bf16.msra.mxu0 %v1628
      %1640 = vmatprep.subr.bf16.mxu0 0
      %1641 = vmatpush1.bf16.msra.mxu0 %v1629
      %1642 = vmatprep.subr.bf16.mxu0 0
      %1643 = vmatpush1.bf16.msra.mxu0 0
      %1644 = vmatprep.subr.bf16.mxu0 0
      %1645 = vmatpush1.bf16.msra.mxu0 0
      %1646 = vmatprep.subr.bf16.mxu0 0
      %1647 = vmatpush1.bf16.msra.mxu0 0
      %1648 = vmatprep.subr.bf16.mxu0 0
      %1649 = vmatpush1.bf16.msra.mxu0 0
      %1650 = vmatprep.subr.bf16.mxu0 0
      %1651 = vmatpush1.bf16.msra.mxu0 0
      %1652 = vmatprep.subr.bf16.mxu0 0
      %1653 = vmatpush1.bf16.msra.mxu0 0
      %1654 = vmatprep.subr.bf16.mxu0 0
      %1655 = vmatpush1.bf16.msra.mxu0 0
      %1656 = vmatprep.subr.bf16.mxu0 0
      %1657 = vmatpush1.bf16.msra.mxu0 0
      %1658 = vmatprep.subr.bf16.mxu0 0
      %1659 = vmatpush1.bf16.msra.mxu0 0
      %1660 = vmatprep.subr.bf16.mxu0 0
      %1661 = vmatpush1.bf16.msra.mxu0 0
      %1662 = vmatprep.subr.bf16.mxu0 0
      %1663 = vmatpush1.bf16.msra.mxu0 0
      %1664 = vmatprep.subr.bf16.mxu0 0
      %1665 = vmatpush1.bf16.msra.mxu0 0
      %1666 = vmatprep.subr.bf16.mxu0 0
      %1667 = vmatpush1.bf16.msra.mxu0 0
      %1668 = vmatprep.subr.bf16.mxu0 0
      %1669 = vmatpush1.bf16.msra.mxu0 0
      %1670 = vmatprep.mubr.bf16.mxu0 0
      %1671 = vmatmul.mubr.bf16.gmra.mrb[0].mxu0 %v1633
      %v1672 = vpop.f32.mrb[0].mxu0
      %v1673 = vadd.f32 %v1619, %v1672
      %v1674 = vpop.f32.mrb[0].mxu0
      %v1675 = vpop.f32.mrb[0].mxu0
      %v1676 = vadd.f32 %v1619, %v1675
      %v1677 = vpop.f32.mrb[0].mxu0
      %1678 = vmatprep.mubr.bf16.mxu0 0
      %1679 = vmatmul.mubr.bf16.gmra.mrb[0].mxu0 %v1636
      %v1680 = vpop.f32.mrb[0].mxu0
      %v1681 = vadd.f32 %v1619, %v1680
      %v1682 = vpop.f32.mrb[0].mxu0
      %v1683 = vpop.f32.mrb[0].mxu0
      %v1684 = vpop.f32.mrb[0].mxu0
      %1685 = vdwg.mxu0
      %v1686 = vmul.f32 %v1673, 0.5
      %v1687 = vmul.f32 %v1676, 0.5
      %v1688 = vmul.f32 %v1681, 0.5
      %v1689 = vmul.f32 %v1673, 0.044715
      %v1690 = vmul.f32 %v1676, 0.044715
      %v1691 = vmul.f32 %v1681, 0.044715
      %v1692 = vmul.f32 %v1689, %v1673
      %v1693 = vmul.f32 %v1690, %v1676
      %v1694 = vmul.f32 %v1691, %v1681
      %v1695 = vmul.f32 %v1692, %v1673
      %v1696 = vmul.f32 %v1693, %v1676
      %v1697 = vmul.f32 %v1694, %v1681
      %v1698 = vadd.f32 %v1673, %v1695
      %v1699 = vadd.f32 %v1676, %v1696
      %v1700 = vadd.f32 %v1681, %v1697
      %v1701 = vmul.f32 %v1698, 0.7978846
      %v1702 = vmul.f32 %v1699, 0.7978846
      %v1703 = vmul.f32 %v1700, 0.7978846
      %v1704 = vtanh.pop %v1701
      %v1705 = vtanh.pop %v1702
      %v1706 = vtanh.pop %v1703
      %v1707 = vadd.f32 %v1704, 1.0
      %v1708 = vadd.f32 %v1705, 1.0
      %v1709 = vadd.f32 %v1706, 1.0
      %v1710 = vmul.f32 %v1686, %v1707
      %v1711 = vmul.f32 %v1687, %v1708
      %v1712 = vmul.f32 %v1688, %v1709
      %s1713 = scalar_lea.vmem %s6, 64
      %v1714 = vld [vmem:[%s1713] sm:$0xf]
      %v1715 = vld [vmem:[%s1713 + $0x4] sm:$0xf]
      %v1716 = vld [vmem:[%s1713 + $0x8] sm:$0xf]
      %v1717 = vld [vmem:[%s1713 + $0xc] sm:$0xf]
      %v1718 = vld [vmem:[%s1713 + $0x10] sm:$0xf]
      %v1719 = vld [vmem:[%s1713 + $0x14] sm:$0xf]
      %v1720 = vld [vmem:[%s1713 + $0x18] sm:$0xf]
      %v1721 = vld [vmem:[%s1713 + $0x1c] sm:$0xf]
      %v1722 = vld [vmem:[%s1713 + $0x20] sm:$0xf]
      %v1723 = vld [vmem:[%s1713 + $0x24] sm:$0xf]
      %v1724 = vld [vmem:[%s1713 + $0x28] sm:$0xf]
      %v1725 = vld [vmem:[%s1713 + $0x2c] sm:$0xf]
      %v1726 = vld [vmem:[%s1713 + $0x30] sm:$0xf]
      %v1727 = vld [vmem:[%s1713 + $0x34] sm:$0xf]
      %v1728 = vld [vmem:[%s1713 + $0x38] sm:$0xf]
      %v1729 = vld [vmem:[%s1713 + $0x3c] sm:$0xf]
      %v1730 = vpack.c.bf16 %v1711, %v1710
      %v1731 = vpack.c.bf16 %v1712, %v1712
      %v1748 = vunpack.c.l.b16 %v1714
      %v1749 = vunpack.c.l.b16 %v1715
      %v1750 = vunpack.c.l.b16 %v1716
      %v1751 = vunpack.c.l.b16 %v1717
      %v1752 = vunpack.c.l.b16 %v1718
      %v1753 = vunpack.c.l.b16 %v1719
      %v1754 = vunpack.c.l.b16 %v1720
      %v1755 = vunpack.c.l.b16 %v1721
      %v1756 = vunpack.c.l.b16 %v1722
      %v1757 = vunpack.c.l.b16 %v1723
      %v1758 = vunpack.c.l.b16 %v1724
      %v1759 = vunpack.c.l.b16 %v1725
      %v1760 = vunpack.c.l.b16 %v1726
      %v1761 = vunpack.c.l.b16 %v1727
      %v1762 = vunpack.c.l.b16 %v1728
      %v1763 = vunpack.c.l.b16 %v1729
      %v1764 = vpack.c.b16 %v1749, %v1748
      %v1765 = vpack.c.b16 %v1751, %v1750
      %v1766 = vpack.c.b16 %v1753, %v1752
      %v1767 = vpack.c.b16 %v1755, %v1754
      %v1768 = vpack.c.b16 %v1757, %v1756
      %v1769 = vpack.c.b16 %v1759, %v1758
      %v1770 = vpack.c.b16 %v1761, %v1760
      %v1771 = vpack.c.b16 %v1763, %v1762
      %1780 = vmatprep.subr.bf16.mxu0 0
      %1781 = vmatpush1.bf16.msra.mxu0 %v1764
      %1782 = vmatprep.subr.bf16.mxu0 0
      %1783 = vmatpush1.bf16.msra.mxu0 %v1765
      %1784 = vmatprep.subr.bf16.mxu0 0
      %1785 = vmatpush1.bf16.msra.mxu0 %v1766
      %1786 = vmatprep.subr.bf16.mxu0 0
      %1787 = vmatpush1.bf16.msra.mxu0 %v1767
      %1788 = vmatprep.subr.bf16.mxu0 0
      %1789 = vmatpush1.bf16.msra.mxu0 %v1768
      %1790 = vmatprep.subr.bf16.mxu0 0
      %1791 = vmatpush1.bf16.msra.mxu0 %v1769
      %1792 = vmatprep.subr.bf16.mxu0 0
      %1793 = vmatpush1.bf16.msra.mxu0 %v1770
      %1794 = vmatprep.subr.bf16.mxu0 0
      %1795 = vmatpush1.bf16.msra.mxu0 %v1771
      %1796 = vmatprep.subr.bf16.mxu0 0
      %1797 = vmatpush1.bf16.msra.mxu0 0
      %1798 = vmatprep.subr.bf16.mxu0 0
      %1799 = vmatpush1.bf16.msra.mxu0 0
      %1800 = vmatprep.subr.bf16.mxu0 0
      %1801 = vmatpush1.bf16.msra.mxu0 0
      %1802 = vmatprep.subr.bf16.mxu0 0
      %1803 = vmatpush1.bf16.msra.mxu0 0
      %1804 = vmatprep.subr.bf16.mxu0 0
      %1805 = vmatpush1.bf16.msra.mxu0 0
      %1806 = vmatprep.subr.bf16.mxu0 0
      %1807 = vmatpush1.bf16.msra.mxu0 0
      %1808 = vmatprep.subr.bf16.mxu0 0
      %1809 = vmatpush1.bf16.msra.mxu0 0
      %1810 = vmatprep.subr.bf16.mxu0 0
      %1811 = vmatpush1.bf16.msra.mxu0 0
      %1812 = vmatprep.mubr.bf16.mxu0 0
      %1813 = vmatmul.mubr.bf16.gmra.mrb[0].mxu0 %v1730
      %v1814 = vpop.f32.mrb[0].mxu0
      %v1815 = vadd.f32 0.0, %v1814
      %v1816 = vpop.f32.mrb[0].mxu0
      %v1817 = vpop.f32.mrb[0].mxu0
      %v1818 = vadd.f32 0.0, %v1817
      %v1819 = vpop.f32.mrb[0].mxu0
      %1820 = vmatprep.mubr.bf16.mxu0 0
      %1821 = vmatmul.mubr.bf16.gmra.mrb[0].mxu0 %v1731
      %v1822 = vpop.f32.mrb[0].mxu0
      %v1823 = vadd.f32 0.0, %v1822
      %v1824 = vpop.f32.mrb[0].mxu0
      %v1825 = vpop.f32.mrb[0].mxu0
      %v1826 = vpop.f32.mrb[0].mxu0
      %1827 = vdwg.mxu0
      %v1828 = vadd.f32 %v1553, %v1815
      %v1829 = vadd.f32 %v1554, %v1818
      %v1830 = vadd.f32 %v1555, %v1823
      %v1831 = vlaneseq
      %v1832 = vshrl.u32 %v1831, 7
      %v1833 = vsub.s32 7, %v1832
      %v1834 = vrot.slane %v1171, %v1833
      %v1835 = vadd.f32 %v1828, %v1834
      %v1836 = vadd.f32 %v1829, %v1834
      %v1837 = vadd.f32 %v1830, %v1834
      %v1839 = vrot.slane %v1835, 1
      %v1841 = vrot.slane %v1835, 2
      %v1844 = vrot.slane %v1836, 7
      %vm1846 = vcmask 1040384
      %v1847 = vsel %vm1846, %v1839, %v1841
      %vm1848 = vcmask 1041408
      %v1849 = vsel %vm1848, %v1847, %v1844
      %vm1850 = vcmask 1042432
      %v1851 = vsel %vm1850, %v1849, %v1836
      %v1852 = vrot.slane %v1835, 3
      %v1854 = vrot.slane %v1836, 1
      %v1856 = vsel %vm1846, %v1841, %v1852
      %v1857 = vsel %vm1848, %v1856, %v1836
      %v1858 = vsel %vm1850, %v1857, %v1854
      %v1859 = vrot.slane %v1835, 5
      %v1861 = vrot.slane %v1835, 6
      %v1863 = vrot.slane %v1836, 3
      %v1865 = vrot.slane %v1836, 4
      %v1867 = vsel %vm1846, %v1859, %v1861
      %v1868 = vsel %vm1848, %v1867, %v1863
      %v1869 = vsel %vm1850, %v1868, %v1865
      %v1871 = vrot.slane %v1837, 5
      %v1873 = vsel %vm1846, %v1861, %v1844
      %v1874 = vsel %vm1848, %v1873, %v1865
      %v1875 = vsel %vm1850, %v1874, %v1871
      %1877 = vrot.lane.b32.xlu0 %v1858, 32
      %v1878 = vpop.permute.xlu0 %1877
      %1881 = vrot.lane.b32.xlu0 %v1869, 64
      %v1882 = vpop.permute.xlu0 %1881
      %1885 = vrot.lane.b32.xlu0 %v1875, 96
      %v1886 = vpop.permute.xlu0 %1885
      %v1888 = vsel %vm504, %v1851, %v1878
      %vm1889 = vcmask 523264
      %v1890 = vsel %vm1889, %v1888, %v1882
      %vm1891 = vcmask 785408
      %v1892 = vsel %vm1891, %v1890, %v1886
      %v1893 = vld [vmem:[%s8] sm:$0x1]
      %v1894 = vld [vmem:[%s8 + $0x1] sm:$0x1]
      %v1895 = vsel %vm756, %v1892, 0.0
      %1896 = vadd.xlane.f32.xlu0 %v1895
      %v1897 = vpop.xlane.xlu0 %1896
      %v1898 = vrcp.pop 128.0
      %v1899 = vmul.f32 %v1897, %v1898
      %v1900 = vsub.f32 %v1892, %v1899
      %v1901 = vmul.f32 %v1900, %v1900
      %v1902 = vsel %vm756, %v1901, 0.0
      %1903 = vadd.xlane.f32.xlu0 %v1902
      %v1904 = vpop.xlane.xlu0 %1903
      %v1905 = vmul.f32 %v1904, %v1898
      %v1906 = vadd.f32 %v1905, 1e-06
      %v1907 = vrsqrt.pop %v1906
      %v1908 = vmul.f32 %v1900, %v1907
      %v1909 = vlaneseq
      %v1910 = vshrl.u32 %v1909, 7
      %v1911 = vsub.s32 0, %v1910
      %v1912 = vrot.slane %v1893, %v1911
      %v1913 = vmul.f32 %v1908, %v1912
      %v1914 = vlaneseq
      %v1915 = vshrl.u32 %v1914, 7
      %v1916 = vsub.s32 0, %v1915
      %v1917 = vrot.slane %v1894, %v1916
      %v1918 = vadd.f32 %v1913, %v1917
      %v1919 = vld [vmem:[%s9] sm:$0xf]
      %v1920 = vld [vmem:[%s9 + $0x4] sm:$0xf]
      %v1921 = vld [vmem:[%s9 + $0x8] sm:$0xf]
      %v1922 = vld [vmem:[%s9 + $0xc] sm:$0xf]
      %v1923 = vld [vmem:[%s9 + $0x10] sm:$0xf]
      %v1924 = vld [vmem:[%s9 + $0x14] sm:$0xf]
      %v1925 = vld [vmem:[%s9 + $0x18] sm:$0xf]
      %v1926 = vld [vmem:[%s9 + $0x1c] sm:$0xf]
      %v1927 = vld [vmem:[%s9 + $0x20] sm:$0xf]
      %v1928 = vld [vmem:[%s9 + $0x24] sm:$0xf]
      %v1929 = vld [vmem:[%s9 + $0x28] sm:$0xf]
      %v1930 = vld [vmem:[%s9 + $0x2c] sm:$0xf]
      %v1931 = vld [vmem:[%s9 + $0x30] sm:$0xf]
      %v1932 = vld [vmem:[%s9 + $0x34] sm:$0xf]
      %v1933 = vld [vmem:[%s9 + $0x38] sm:$0xf]
      %v1934 = vld [vmem:[%s9 + $0x3c] sm:$0xf]
      %v1935 = vpack.c.bf16 %v1918, %v1918
      %v1936 = vld [vmem:[%s11] sm:$0x1]
      %v1937 = vlaneseq
      %v1938 = vshrl.u32 %v1937, 7
      %v1939 = vsub.s32 0, %v1938
      %v1940 = vrot.slane %v1936, %v1939
      %v1957 = vunpack.c.l.b16 %v1919
      %v1958 = vunpack.c.l.b16 %v1920
      %v1959 = vunpack.c.l.b16 %v1921
      %v1960 = vunpack.c.l.b16 %v1922
      %v1961 = vunpack.c.l.b16 %v1923
      %v1962 = vunpack.c.l.b16 %v1924
      %v1963 = vunpack.c.l.b16 %v1925
      %v1964 = vunpack.c.l.b16 %v1926
      %v1965 = vunpack.c.l.b16 %v1927
      %v1966 = vunpack.c.l.b16 %v1928
      %v1967 = vunpack.c.l.b16 %v1929
      %v1968 = vunpack.c.l.b16 %v1930
      %v1969 = vunpack.c.l.b16 %v1931
      %v1970 = vunpack.c.l.b16 %v1932
      %v1971 = vunpack.c.l.b16 %v1933
      %v1972 = vunpack.c.l.b16 %v1934
      %v1973 = vpack.c.b16 %v1958, %v1957
      %v1974 = vpack.c.b16 %v1960, %v1959
      %v1975 = vpack.c.b16 %v1962, %v1961
      %v1976 = vpack.c.b16 %v1964, %v1963
      %v1977 = vpack.c.b16 %v1966, %v1965
      %v1978 = vpack.c.b16 %v1968, %v1967
      %v1979 = vpack.c.b16 %v1970, %v1969
      %v1980 = vpack.c.b16 %v1972, %v1971
      %1989 = vmatprep.subr.bf16.mxu0 0
      %1990 = vmatpush1.bf16.msra.mxu0 %v1973
      %1991 = vmatprep.subr.bf16.mxu0 0
      %1992 = vmatpush1.bf16.msra.mxu0 %v1974
      %1993 = vmatprep.subr.bf16.mxu0 0
      %1994 = vmatpush1.bf16.msra.mxu0 %v1975
      %1995 = vmatprep.subr.bf16.mxu0 0
      %1996 = vmatpush1.bf16.msra.mxu0 %v1976
      %1997 = vmatprep.subr.bf16.mxu0 0
      %1998 = vmatpush1.bf16.msra.mxu0 %v1977
      %1999 = vmatprep.subr.bf16.mxu0 0
      %2000 = vmatpush1.bf16.msra.mxu0 %v1978
      %2001 = vmatprep.subr.bf16.mxu0 0
      %2002 = vmatpush1.bf16.msra.mxu0 %v1979
      %2003 = vmatprep.subr.bf16.mxu0 0
      %2004 = vmatpush1.bf16.msra.mxu0 %v1980
      %2005 = vmatprep.subr.bf16.mxu0 0
      %2006 = vmatpush1.bf16.msra.mxu0 0
      %2007 = vmatprep.subr.bf16.mxu0 0
      %2008 = vmatpush1.bf16.msra.mxu0 0
      %2009 = vmatprep.subr.bf16.mxu0 0
      %2010 = vmatpush1.bf16.msra.mxu0 0
      %2011 = vmatprep.subr.bf16.mxu0 0
      %2012 = vmatpush1.bf16.msra.mxu0 0
      %2013 = vmatprep.subr.bf16.mxu0 0
      %2014 = vmatpush1.bf16.msra.mxu0 0
      %2015 = vmatprep.subr.bf16.mxu0 0
      %2016 = vmatpush1.bf16.msra.mxu0 0
      %2017 = vmatprep.subr.bf16.mxu0 0
      %2018 = vmatpush1.bf16.msra.mxu0 0
      %2019 = vmatprep.subr.bf16.mxu0 0
      %2020 = vmatpush1.bf16.msra.mxu0 0
      %2021 = vmatprep.mubr.bf16.mxu0 0
      %2022 = vmatmul.mubr.bf16.gmra.mrb[0].mxu0 %v1935
      %v2023 = vpop.f32.mrb[0].mxu0
      %v2024 = vadd.f32 %v1940, %v2023
      %v2025 = vpop.f32.mrb[0].mxu0
      %v2026 = vpop.f32.mrb[0].mxu0
      %v2027 = vpop.f32.mrb[0].mxu0
      %2028 = vdwg.mxu0
      %v2029 = vmul.f32 %v2024, 0.5
      %v2030 = vmul.f32 %v2024, 0.044715
      %v2031 = vmul.f32 %v2030, %v2024
      %v2032 = vmul.f32 %v2031, %v2024
      %v2033 = vadd.f32 %v2024, %v2032
      %v2034 = vmul.f32 %v2033, 0.7978846
      %v2035 = vtanh.pop %v2034
      %v2036 = vadd.f32 %v2035, 1.0
      %v2037 = vmul.f32 %v2029, %v2036
      %v2038 = vld [vmem:[%s10] sm:$0xf]
      %v2039 = vld [vmem:[%s10 + $0x4] sm:$0xf]
      %v2040 = vld [vmem:[%s10 + $0x8] sm:$0xf]
      %v2041 = vld [vmem:[%s10 + $0xc] sm:$0xf]
      %v2042 = vld [vmem:[%s10 + $0x10] sm:$0xf]
      %v2043 = vld [vmem:[%s10 + $0x14] sm:$0xf]
      %v2044 = vld [vmem:[%s10 + $0x18] sm:$0xf]
      %v2045 = vld [vmem:[%s10 + $0x1c] sm:$0xf]
      %v2046 = vpack.c.bf16 %v2037, %v2037
      %v2047 = vld [vmem:[%s11 + $0x1] sm:$0x1]
      %v2048 = vlaneseq
      %v2049 = vshrl.u32 %v2048, 7
      %v2050 = vsub.s32 0, %v2049
      %v2051 = vrot.slane %v2047, %v2050
      %v2060 = vunpack.c.l.b16 %v2038
      %v2061 = vunpack.c.l.b16 %v2039
      %v2062 = vunpack.c.l.b16 %v2040
      %v2063 = vunpack.c.l.b16 %v2041
      %v2064 = vunpack.c.l.b16 %v2042
      %v2065 = vunpack.c.l.b16 %v2043
      %v2066 = vunpack.c.l.b16 %v2044
      %v2067 = vunpack.c.l.b16 %v2045
      %v2068 = vpack.c.b16 %v2061, %v2060
      %v2069 = vpack.c.b16 %v2063, %v2062
      %v2070 = vpack.c.b16 %v2065, %v2064
      %v2071 = vpack.c.b16 %v2067, %v2066
      %v2077 = vsel %vm1889, %v2046, 0
      %2079 = vmatprep.subr.bf16.mxu0 0
      %2080 = vmatpush1.bf16.msra.mxu0 %v2068
      %2081 = vmatprep.subr.bf16.mxu0 0
      %2082 = vmatpush1.bf16.msra.mxu0 %v2069
      %2083 = vmatprep.subr.bf16.mxu0 0
      %2084 = vmatpush1.bf16.msra.mxu0 %v2070
      %2085 = vmatprep.subr.bf16.mxu0 0
      %2086 = vmatpush1.bf16.msra.mxu0 %v2071
      %2087 = vmatprep.subr.bf16.mxu0 0
      %2088 = vmatpush1.bf16.msra.mxu0 0
      %2089 = vmatprep.subr.bf16.mxu0 0
      %2090 = vmatpush1.bf16.msra.mxu0 0
      %2091 = vmatprep.subr.bf16.mxu0 0
      %2092 = vmatpush1.bf16.msra.mxu0 0
      %2093 = vmatprep.subr.bf16.mxu0 0
      %2094 = vmatpush1.bf16.msra.mxu0 0
      %2095 = vmatprep.subr.bf16.mxu0 0
      %2096 = vmatpush1.bf16.msra.mxu0 0
      %2097 = vmatprep.subr.bf16.mxu0 0
      %2098 = vmatpush1.bf16.msra.mxu0 0
      %2099 = vmatprep.subr.bf16.mxu0 0
      %2100 = vmatpush1.bf16.msra.mxu0 0
      %2101 = vmatprep.subr.bf16.mxu0 0
      %2102 = vmatpush1.bf16.msra.mxu0 0
      %2103 = vmatprep.subr.bf16.mxu0 0
      %2104 = vmatpush1.bf16.msra.mxu0 0
      %2105 = vmatprep.subr.bf16.mxu0 0
      %2106 = vmatpush1.bf16.msra.mxu0 0
      %2107 = vmatprep.subr.bf16.mxu0 0
      %2108 = vmatpush1.bf16.msra.mxu0 0
      %2109 = vmatprep.subr.bf16.mxu0 0
      %2110 = vmatpush1.bf16.msra.mxu0 0
      %2111 = vmatprep.mubr.bf16.mxu0 0
      %2112 = vmatmul.mubr.bf16.gmra.mrb[0].mxu0 %v2077
      %v2113 = vpop.f32.mrb[0].mxu0
      %v2114 = vadd.f32 %v2051, %v2113
      %v2115 = vpop.f32.mrb[0].mxu0
      %v2116 = vpop.f32.mrb[0].mxu0
      %v2117 = vpop.f32.mrb[0].mxu0
      %2118 = vdwg.mxu0
      %v2120 = vrot.slane %v2114, 1
      %2121 = vrot.lane.b32.xlu0 %v2120, 64
      %v2122 = vpop.permute.xlu0 %2121
      %v2124 = vrot.slane %v2114, 2
      %v2126 = vrot.slane %v2114, 3
      %2127 = vrot.lane.b32.xlu0 %v2126, 64
      %v2128 = vpop.permute.xlu0 %2127
      %v2130 = vsel %vm1889, %v2114, %v2122
      %v2131 = vsel %vm1889, %v2124, %v2128
      %v2134 = vcombine.low %v2130, %v2131
      %v2136 = vunpack.c.l.s4 1966171168
      %v2137 = vunpack.c.0.s8 %v2136
      %v2138 = vlaneseq
      %v2139 = vshrl.u32 %v2138, 7
      %v2140 = vsub.s32 %v2137, %v2139
      %v2141 = vrot.slane %v2134, %v2140
      %v2143 = vunpack.c.l.s4 1966171168
      %v2144 = vunpack.c.0.s8 %v2143
      %v2145 = vlaneseq
      %v2146 = vshrl.u32 %v2145, 7
      %v2147 = vsub.s32 %v2144, %v2146
      %v2148 = vrot.slane %v2141, %v2147
      %v2150 = vlaneseq
      %vm2151 = vcmp.ge.s32.totalorder %v2150, 0
      %vm2152 = vcmp.lt.s32.totalorder %v2150, 256
      %vm2153 = vmand %vm2151, %vm2152
      %2154 = vst.msk [vmem:[%s411] sm:$0x3] %vm2153, %v2148
      %p2155 = scmp.lt.s32.totalorder %s23, 1
      %s2156 = scalar_select %p2155, %s23, 1
      %s2157 = smul.addr %s2156, 2
      %s2158 = scalar_lea.vmem %s12, %s2157
      // Predicated region
      $region69: #{forward.1} parent=67 // pred_check
        %p2159 = pneg %p298
      $region70: #{forward.1} parent=67 // pred_check_branch
        %2161 = sbr.rel (%p2159) target = $region72
      $region71: #{forward.1} parent=67 // pred_region
        _
      $region72: #{forward.1} parent=67 // pred_fallthru
        _
    $region68: #{forward.1} parent=5 // pred_fallthru
      _
    %p2162 = scmp.le.s32.totalorder 2, %s18
    // Predicated region
    $region73: #{forward.1} parent=5 // pred_check
      %p2163 = pneg %p2162
    $region74: #{forward.1} parent=5 // pred_check_branch
      %2165 = sbr.rel (%p2163) target = $region76
    $region75: #{forward.1} parent=5 // pred_region
      %s2166 = ssub.s32 %s18, 2
      // Predicated region
      $region77: #{forward.1} parent=75 // pred_check
        %p2167 = pneg %p304
      $region78: #{forward.1} parent=75 // pred_check_branch
        %2169 = sbr.rel (%p2167) target = $region80
      $region79: #{forward.1} parent=75 // pred_region
        %p2170 = scmp.lt.s32.totalorder %s24, 1
        %s2171 = scalar_select %p2170, %s24, 1
        %s2172 = smul.addr %s2171, 2
        %s2173 = scalar_lea.vmem %s12, %s2172
      $region80: #{forward.1} parent=75 // pred_fallthru
        _
    $region76: #{forward.1} parent=5 // pred_fallthru
      _
  $region6: #{forward.1} parent=0 // loop_footer
    %s22 = sadd.s32 1, %s18
  $region7: #{forward.1} parent=0 // loop_footer_branch
    %17 = sbr.rel target = $region3
  $region8: #{forward.1} parent=0 // loop_exit
    _

</llo_original>
